<compile_context>
chip_gen: v5e
topology: v5e:2x2
jax: 0.10.0
libtpu: 0.0.40
codegen_flags: <defaults>
</compile_context>

<pallas_src>
import functools

import jax
import jax.numpy as jnp
from jax.experimental import pallas as pl
from jax.experimental.pallas import tpu as pltpu

EPS = 1e-5            # torch.nn.LayerNorm default eps
INV_SQRT2 = 0.7071067811865476

_VMEM_LIMIT_BYTES = 48 * 1024 * 1024   # < v7x 64 MiB/TC, > default scoped limits
_VMEM_BUDGET_BYTES = 48 * 1024 * 1024


def _erf(x, recip=None):
    # Abramowitz & Stegun 7.1.26 rational approximation (max abs err ~1.5e-7)
    # -> reproduces torch's exact-erf GELU; exp() lands on the EUP slot.
    if recip is None:
        recip = lambda v: 1.0 / v
    p = 0.3275911
    a1, a2, a3, a4, a5 = (0.254829592, -0.284496736, 1.421413741,
                          -1.453152027, 1.061405429)
    sgn = jnp.where(x >= 0.0, 1.0, -1.0)
    ax = jnp.abs(x)
    t = recip(1.0 + p * ax)
    poly = ((((a5 * t + a4) * t + a3) * t + a2) * t + a1) * t
    return sgn * (1.0 - poly * jnp.exp(-ax * ax))


def _gelu(x, recip=None):
    # exact GELU (torch nn.GELU default), up to ~1e-7 erf approximation error
    return 0.5 * x * (1.0 + _erf(x * INV_SQRT2, recip=recip))


def _ln_last(x, g, b):
    # LayerNorm over the last axis (biased variance, like torch), f32 stats
    mu = jnp.mean(x, axis=-1, keepdims=True)
    d = x - mu
    var = jnp.mean(d * d, axis=-1, keepdims=True)
    return d * jax.lax.rsqrt(var + EPS) * g + b


def mixer_kernel(x_ref, proj_w_ref, proj_b_ref,
                 tok_g_ref, tok_bt_ref, tok_w1_ref, tok_b1_ref,
                 tok_w2_ref, tok_b2_ref,
                 ch_g_ref, ch_bt_ref, ch_w1_ref, ch_b1_ref,
                 ch_w2_ref, ch_b2_ref,
                 gln_g_ref, gln_b_ref, head_w_ref, head_b_ref,
                 out_ref, *, num_layers, classes):
    # One grid step == one block of BB batch elements.  x block: (1, BB, S, Din)
    _, BB, S, Din = x_ref.shape
    C = proj_w_ref.shape[1]
    CPAD = out_ref.shape[-1]
    bf16 = jnp.bfloat16
    recip = pl.reciprocal   # exact EUP reciprocal for the GELU rational term

    # ---- Per_patch_Fully_connected: Linear(Din -> C) on all BB*S rows at once
    xf = x_ref[0].reshape(BB * S, Din)                       # bf16, leading-dim merge
    h = (jnp.dot(xf, proj_w_ref[...], preferred_element_type=jnp.float32)
         + proj_b_ref[...]).reshape(BB, S, C)                # f32 (BB, S, C)

    def layer(i, h):
        # ---- token mixing MLP (mixes over S; one batched transpose each way)
        t = jnp.swapaxes(h, 1, 2).reshape(BB * C, S)         # (BB*C, S)
        t = _ln_last(t, tok_g_ref[i], tok_bt_ref[i])
        u = _gelu(jnp.dot(t.astype(bf16), tok_w1_ref[i],
                          preferred_element_type=jnp.float32) + tok_b1_ref[i],
                  recip=recip)
        u = jnp.dot(u.astype(bf16), tok_w2_ref[i],
                    preferred_element_type=jnp.float32) + tok_b2_ref[i]
        h = h + jnp.swapaxes(u.reshape(BB, C, S), 1, 2)      # residual

        # ---- channel mixing MLP (mixes over C; flattened (BB*S, C) rows) ----
        c = _ln_last(h.reshape(BB * S, C), ch_g_ref[i], ch_bt_ref[i])
        v = _gelu(jnp.dot(c.astype(bf16), ch_w1_ref[i],
                          preferred_element_type=jnp.float32) + ch_b1_ref[i],
                  recip=recip)
        v = jnp.dot(v.astype(bf16), ch_w2_ref[i],
                    preferred_element_type=jnp.float32) + ch_b2_ref[i]
        return h + v.reshape(BB, S, C)                       # residual

    h = jax.lax.fori_loop(0, num_layers, layer, h)

    # ---- LayerNorm([S, C]) per batch element (batched), channel mean -> (BB,S)
    mu = jnp.mean(jnp.mean(h, axis=2, keepdims=True), axis=1, keepdims=True)
    d = h - mu
    var = jnp.mean(jnp.mean(d * d, axis=2, keepdims=True), axis=1, keepdims=True)
    hn = d * jax.lax.rsqrt(var + EPS) * gln_g_ref[...] + gln_b_ref[...]
    m = jnp.mean(hn, axis=2)                                 # (BB, S)

    # ---- head Linear(S -> classes), lane-padded to CPAD, masked softmax ----
    logits = (jnp.dot(m.astype(bf16), head_w_ref[...],
                      preferred_element_type=jnp.float32) + head_b_ref[...])
    lane = jax.lax.broadcasted_iota(jnp.int32, (BB, CPAD), 1)
    logits = jnp.where(lane < classes, logits, -1e30)        # kill padded lanes
    z = logits - jnp.max(logits, axis=-1, keepdims=True)
    e = jnp.exp(z)
    inv = pl.reciprocal(jnp.sum(e, axis=-1, keepdims=True), approx=True)
    out_ref[0] = e * inv                                     # (BB, CPAD), lane-dense


def make_params(key, S, Din, C, N, classes):
    def nrm(k, shape, scale):
        return scale * jax.random.normal(k, shape, dtype=jnp.float32)

    ks = iter(jax.random.split(key, 24))
    return dict(
        proj_w=nrm(next(ks), (Din, C), 0.05),
        proj_b=nrm(next(ks), (1, C), 0.01),
        tok_g=1.0 + nrm(next(ks), (N, 1, S), 0.01),
        tok_bt=nrm(next(ks), (N, 1, S), 0.01),
        tok_w1=nrm(next(ks), (N, S, S), 0.05),
        tok_b1=nrm(next(ks), (N, 1, S), 0.01),
        tok_w2=nrm(next(ks), (N, S, S), 0.05),
        tok_b2=nrm(next(ks), (N, 1, S), 0.01),
        ch_g=1.0 + nrm(next(ks), (N, 1, C), 0.01),
        ch_bt=nrm(next(ks), (N, 1, C), 0.01),
        ch_w1=nrm(next(ks), (N, C, C), 0.05),
        ch_b1=nrm(next(ks), (N, 1, C), 0.01),
        ch_w2=nrm(next(ks), (N, C, C), 0.05),
        ch_b2=nrm(next(ks), (N, 1, C), 0.01),
        gln_g=1.0 + nrm(next(ks), (S, C), 0.01),
        gln_b=nrm(next(ks), (S, C), 0.01),
        head_w=nrm(next(ks), (S, classes), 0.1),
        head_b=nrm(next(ks), (1, classes), 0.01),
    )


_PARAM_ORDER = ("proj_w", "proj_b",
                "tok_g", "tok_bt", "tok_w1", "tok_b1", "tok_w2", "tok_b2",
                "ch_g", "ch_bt", "ch_w1", "ch_b1", "ch_w2", "ch_b2",
                "gln_g", "gln_b", "head_w", "head_b")

# matmul weights cast to bf16 (MXU-native); biases / LN affine stay f32
_BF16_WEIGHTS = ("proj_w", "tok_w1", "tok_w2", "ch_w1", "ch_w2", "head_w")


def _pick_block_b(B, S, C, Din, cpad, weight_bytes):
    """Batch-block size from a VMEM budget, targeting >=512 matmul rows but
    keeping >=2 grid blocks so the 'parallel' axis can shard over v7x's 2 TCs."""
    # f32 working set per batch element (h + transposed view + MLP temps +
    # epilogue) plus the double-buffered bf16 input block and f32 output block.
    act = 4 * S * C * 6 + 2 * 2 * S * Din + 2 * 4 * cpad
    avail = _VMEM_BUDGET_BYTES - 2 * weight_bytes        # weights double-buffered
    bb_cap = max(1, avail // max(act, 1))
    bb_target = max(1, -(-512 // S))                     # >=512 rows per matmul
    bb = int(min(bb_cap, bb_target, B))
    if B >= 2:
        bb = min(bb, -(-B // 2))                         # ensure n_blocks >= 2
    return max(1, bb)


@functools.partial(jax.jit, static_argnames=("patch_size", "num_layers", "classes"))
def mlp_mixer_forward(x_nchw, params, *, patch_size, num_layers, classes):
    if x_nchw.ndim == 3:                     # torch: unsqueeze 3-D inputs
        x_nchw = x_nchw[None]
    B, Cin, H, W = x_nchw.shape
    S = (H * W) // (patch_size * patch_size)
    Din = Cin * patch_size * patch_size
    C = params["proj_w"].shape[1]
    CPAD = -(-classes // 128) * 128          # lane-dense output width

    # same semantics as torch.reshape(x, (-1, S, Din)); DMA the input as bf16
    # (it is a bf16 matmul operand anyway) -> half the HBM->VMEM bytes.
    x_tok = jnp.reshape(x_nchw, (B, S, Din)).astype(jnp.bfloat16)

    # pad the head to CPAD lanes so the output store is an unmasked full vst
    head_w = jnp.pad(params["head_w"], ((0, 0), (0, CPAD - classes)))
    head_b = jnp.pad(params["head_b"], ((0, 0), (0, CPAD - classes)))

    param_list = []
    for k in _PARAM_ORDER:
        a = head_w if k == "head_w" else head_b if k == "head_b" else params[k]
        if k in _BF16_WEIGHTS:
            a = a.astype(jnp.bfloat16)
        param_list.append(a)
    weight_bytes = sum(int(a.size) * a.dtype.itemsize for a in param_list)

    BB = _pick_block_b(B, S, C, Din, CPAD, weight_bytes)
    n_blocks = -(-B // BB)
    B_pad = n_blocks * BB
    if B_pad != B:
        x_tok = jnp.pad(x_tok, ((0, B_pad - B), (0, 0), (0, 0)))
    # leading block axis: every BlockSpec's trailing dims == full array dims,
    # so any BB is layout-legal (no (8,128) issues on the batch dim).
    x_blk = x_tok.reshape(n_blocks, BB, S, Din)

    # TODO(synk): at realistic sizes, give these resident weights
    # pipeline_mode=pl.Buffered(1) (constant index_map -> single buffer).
    def full_spec(a):
        nd = a.ndim
        return pl.BlockSpec(a.shape, lambda b, _nd=nd: (0,) * _nd)

    in_specs = ([pl.BlockSpec((1, BB, S, Din), lambda b: (b, 0, 0, 0))]
                + [full_spec(a) for a in param_list])
    out_spec = pl.BlockSpec((1, BB, CPAD), lambda b: (b, 0, 0))

    # Advisory cost estimate so XLA can overlap the call with surrounding HLO.
    flops = int(2 * B_pad * S * Din * C
                + num_layers * B_pad * (4 * C * S * S + 4 * S * C * C)
                + 2 * B_pad * S * CPAD)
    transcendentals = int(B_pad * (2 * num_layers * S * C + CPAD))
    bytes_accessed = int(x_tok.size * 2 + B_pad * CPAD * 4 + weight_bytes)

    out = pl.pallas_call(
        functools.partial(mixer_kernel, num_layers=num_layers, classes=classes),
        grid=(n_blocks,),
        in_specs=in_specs,
        out_specs=out_spec,
        out_shape=jax.ShapeDtypeStruct((n_blocks, BB, CPAD), jnp.float32),
        compiler_params=pltpu.CompilerParams(
            dimension_semantics=("parallel",),
            vmem_limit_bytes=_VMEM_LIMIT_BYTES),
        cost_estimate=pl.CostEstimate(flops=flops,
                                      transcendentals=transcendentals,
                                      bytes_accessed=bytes_accessed),
    )(x_blk, *param_list)
    return out.reshape(B_pad, CPAD)[:B, :classes]


def mlp_mixer_reference(x_nchw, params, *, patch_size):
    """Pure-JAX f32 reference (same math, no Pallas) for a correctness check."""
    B, Cin, H, W = x_nchw.shape
    S = (H * W) // (patch_size * patch_size)
    Din = Cin * patch_size * patch_size
    h = jnp.reshape(x_nchw.astype(jnp.float32), (B, S, Din))
    h = h @ params["proj_w"] + params["proj_b"]
    N = params["tok_w1"].shape[0]
    for i in range(N):
        t = _ln_last(jnp.swapaxes(h, 1, 2), params["tok_g"][i], params["tok_bt"][i])
        u = _gelu(t @ params["tok_w1"][i] + params["tok_b1"][i])
        u = u @ params["tok_w2"][i] + params["tok_b2"][i]
        h = h + jnp.swapaxes(u, 1, 2)
        c = _ln_last(h, params["ch_g"][i], params["ch_bt"][i])
        v = _gelu(c @ params["ch_w1"][i] + params["ch_b1"][i])
        v = v @ params["ch_w2"][i] + params["ch_b2"][i]
        h = h + v
    mu = jnp.mean(h, axis=(1, 2), keepdims=True)
    var = jnp.mean((h - mu) ** 2, axis=(1, 2), keepdims=True)
    hn = (h - mu) * jax.lax.rsqrt(var + EPS) * params["gln_g"] + params["gln_b"]
    m = jnp.mean(hn, axis=2)
    logits = m @ params["head_w"] + params["head_b"]
    return jax.nn.softmax(logits, axis=1)


if __name__ == "__main__":
    # small config: input_size=(3,16,16), patch_size=4, C=32, N=2, classes=10
    B, Cin, H, W = 2, 3, 16, 16
    patch_size = 4
    hidden_c = 32
    num_layers = 2
    classes = 10
    S = (H * W) // (patch_size ** 2)          # 16 tokens
    Din = Cin * patch_size ** 2               # 48

    key = jax.random.PRNGKey(0)
    kx, kp = jax.random.split(key)
    x = jax.random.normal(kx, (B, Cin, H, W), dtype=jnp.float32)
    params = make_params(kp, S, Din, hidden_c, num_layers, classes)

    out = mlp_mixer_forward(x, params, patch_size=patch_size,
                            num_layers=num_layers, classes=classes)
    out = jax.block_until_ready(out)

    ref = mlp_mixer_reference(x, params, patch_size=patch_size)

    assert out.shape == (B, classes)
    assert bool(jnp.all(jnp.isfinite(out)))
    # approx-EUP reciprocal in the softmax denominator -> relaxed row-sum check
    assert bool(jnp.allclose(jnp.sum(out, axis=-1), 1.0, atol=1e-2))
    # bf16 matmul operands with f32 accumulation vs. pure-f32 reference
    assert bool(jnp.allclose(out, ref, atol=5e-3, rtol=1e-2))
    print("KERNEL_OK")
</pallas_src>

<mosaic_0001>
module attributes {stable_mosaic.version = 11 : i64} {
  func.func @mixer_kernel(%arg0: i32, %arg1: memref<1x1x16x48xbf16, #tpu.memory_space<vmem>>, %arg2: memref<48x32xbf16, #tpu.memory_space<vmem>>, %arg3: memref<1x32xf32, #tpu.memory_space<vmem>>, %arg4: memref<2x1x16xf32, #tpu.memory_space<vmem>>, %arg5: memref<2x1x16xf32, #tpu.memory_space<vmem>>, %arg6: memref<2x16x16xbf16, #tpu.memory_space<vmem>>, %arg7: memref<2x1x16xf32, #tpu.memory_space<vmem>>, %arg8: memref<2x16x16xbf16, #tpu.memory_space<vmem>>, %arg9: memref<2x1x16xf32, #tpu.memory_space<vmem>>, %arg10: memref<2x1x32xf32, #tpu.memory_space<vmem>>, %arg11: memref<2x1x32xf32, #tpu.memory_space<vmem>>, %arg12: memref<2x32x32xbf16, #tpu.memory_space<vmem>>, %arg13: memref<2x1x32xf32, #tpu.memory_space<vmem>>, %arg14: memref<2x32x32xbf16, #tpu.memory_space<vmem>>, %arg15: memref<2x1x32xf32, #tpu.memory_space<vmem>>, %arg16: memref<16x32xf32, #tpu.memory_space<vmem>>, %arg17: memref<16x32xf32, #tpu.memory_space<vmem>>, %arg18: memref<16x128xbf16, #tpu.memory_space<vmem>>, %arg19: memref<1x128xf32, #tpu.memory_space<vmem>>, %arg20: memref<1x1x128xf32, #tpu.memory_space<vmem>>) attributes {dimension_semantics = [#tpu.dimension_semantics<parallel>], iteration_bounds = array<i64: 2>, scalar_prefetch = 0 : i64, scratch_operands = 0 : i64, tpu.core_type = #tpu.core_type<tc>, window_params = [{transform_indices = @transform_0, window_bounds = array<i64: 1, 1, 16, 48>}, {pipeline_mode = #tpu.pipeline_mode<synchronous>, transform_indices = @transform_1, window_bounds = array<i64: 48, 32>}, {pipeline_mode = #tpu.pipeline_mode<synchronous>, transform_indices = @transform_2, window_bounds = array<i64: 1, 32>}, {pipeline_mode = #tpu.pipeline_mode<synchronous>, transform_indices = @transform_3, window_bounds = array<i64: 2, 1, 16>}, {pipeline_mode = #tpu.pipeline_mode<synchronous>, transform_indices = @transform_4, window_bounds = array<i64: 2, 1, 16>}, {pipeline_mode = #tpu.pipeline_mode<synchronous>, transform_indices = @transform_5, window_bounds = array<i64: 2, 16, 16>}, {pipeline_mode = #tpu.pipeline_mode<synchronous>, transform_indices = @transform_6, window_bounds = array<i64: 2, 1, 16>}, {pipeline_mode = #tpu.pipeline_mode<synchronous>, transform_indices = @transform_7, window_bounds = array<i64: 2, 16, 16>}, {pipeline_mode = #tpu.pipeline_mode<synchronous>, transform_indices = @transform_8, window_bounds = array<i64: 2, 1, 16>}, {pipeline_mode = #tpu.pipeline_mode<synchronous>, transform_indices = @transform_9, window_bounds = array<i64: 2, 1, 32>}, {pipeline_mode = #tpu.pipeline_mode<synchronous>, transform_indices = @transform_10, window_bounds = array<i64: 2, 1, 32>}, {pipeline_mode = #tpu.pipeline_mode<synchronous>, transform_indices = @transform_11, window_bounds = array<i64: 2, 32, 32>}, {pipeline_mode = #tpu.pipeline_mode<synchronous>, transform_indices = @transform_12, window_bounds = array<i64: 2, 1, 32>}, {pipeline_mode = #tpu.pipeline_mode<synchronous>, transform_indices = @transform_13, window_bounds = array<i64: 2, 32, 32>}, {pipeline_mode = #tpu.pipeline_mode<synchronous>, transform_indices = @transform_14, window_bounds = array<i64: 2, 1, 32>}, {pipeline_mode = #tpu.pipeline_mode<synchronous>, transform_indices = @transform_15, window_bounds = array<i64: 16, 32>}, {pipeline_mode = #tpu.pipeline_mode<synchronous>, transform_indices = @transform_16, window_bounds = array<i64: 16, 32>}, {pipeline_mode = #tpu.pipeline_mode<synchronous>, transform_indices = @transform_17, window_bounds = array<i64: 16, 128>}, {pipeline_mode = #tpu.pipeline_mode<synchronous>, transform_indices = @transform_18, window_bounds = array<i64: 1, 128>}, {transform_indices = @transform_19, window_bounds = array<i64: 1, 1, 128>}]} {
    %c0 = arith.constant 0 : index
    %c0_0 = arith.constant 0 : index
    %c0_1 = arith.constant 0 : index
    %c0_2 = arith.constant 0 : index
    %0 = vector.load %arg1[%c0, %c0_0, %c0_1, %c0_2] : memref<1x1x16x48xbf16, #tpu.memory_space<vmem>>, vector<1x1x16x48xbf16>
    %1 = vector.shape_cast %0 : vector<1x1x16x48xbf16> to vector<1x16x48xbf16>
    %2 = vector.shape_cast %1 : vector<1x16x48xbf16> to vector<16x48xbf16>
    %c0_3 = arith.constant 0 : index
    %c0_4 = arith.constant 0 : index
    %3 = vector.load %arg2[%c0_3, %c0_4] : memref<48x32xbf16, #tpu.memory_space<vmem>>, vector<48x32xbf16>
    %cst = arith.constant dense<0.000000e+00> : vector<16x32xf32>
    %4 = tpu.matmul %2, %3, %cst {dimension_numbers = #tpu.dot_dimension_numbers<[1], [0], [0], [1], [0, 0, 1, 1], [], []>} : vector<16x48xbf16>, vector<48x32xbf16>, vector<16x32xf32> -> vector<16x32xf32>
    %c0_5 = arith.constant 0 : index
    %c0_6 = arith.constant 0 : index
    %5 = vector.load %arg3[%c0_5, %c0_6] : memref<1x32xf32, #tpu.memory_space<vmem>>, vector<1x32xf32>
    %6 = vector.broadcast %5 : vector<1x32xf32> to vector<16x32xf32>
    %7 = arith.addf %4, %6 : vector<16x32xf32>
    %8 = vector.shape_cast %7 : vector<16x32xf32> to vector<1x16x32xf32>
    %c0_i32 = arith.constant 0 : i32
    %c2_i32 = arith.constant 2 : i32
    %9 = arith.addi %c0_i32, %c2_i32 : i32
    %c1_i32 = arith.constant 1 : i32
    %10 = scf.for %arg21 = %c0_i32 to %9 step %c1_i32 iter_args(%arg22 = %8) -> (vector<1x16x32xf32>)  : i32 {
      %67 = tpu.transpose %arg22, [0, 2, 1] : vector<1x16x32xf32> -> vector<1x32x16xf32>
      %68 = vector.shape_cast %67 : vector<1x32x16xf32> to vector<32x16xf32>
      %69 = arith.index_cast %arg21 : i32 to index
      %c0_34 = arith.constant 0 : index
      %c0_35 = arith.constant 0 : index
      %70 = vector.load %arg4[%69, %c0_34, %c0_35] : memref<2x1x16xf32, #tpu.memory_space<vmem>>, vector<1x1x16xf32>
      %71 = vector.shape_cast %70 : vector<1x1x16xf32> to vector<1x16xf32>
      %72 = arith.index_cast %arg21 : i32 to index
      %c0_36 = arith.constant 0 : index
      %c0_37 = arith.constant 0 : index
      %73 = vector.load %arg5[%72, %c0_36, %c0_37] : memref<2x1x16xf32, #tpu.memory_space<vmem>>, vector<1x1x16xf32>
      %74 = vector.shape_cast %73 : vector<1x1x16xf32> to vector<1x16xf32>
      %cst_38 = arith.constant dense<0.000000e+00> : vector<32xf32>
      %75 = vector.multi_reduction <add>, %68, %cst_38 [1] : vector<32x16xf32> to vector<32xf32>
      %76 = vector.shape_cast %75 : vector<32xf32> to vector<32x1xf32>
      %cst_39 = arith.constant 1.600000e+01 : f32
      %77 = vector.broadcast %cst_39 : f32 to vector<32x1xf32>
      %78 = arith.divf %76, %77 : vector<32x1xf32>
      %79 = vector.broadcast %78 : vector<32x1xf32> to vector<32x16xf32>
      %80 = arith.subf %68, %79 : vector<32x16xf32>
      %81 = arith.mulf %80, %80 : vector<32x16xf32>
      %cst_40 = arith.constant dense<0.000000e+00> : vector<32xf32>
      %82 = vector.multi_reduction <add>, %81, %cst_40 [1] : vector<32x16xf32> to vector<32xf32>
      %83 = vector.shape_cast %82 : vector<32xf32> to vector<32x1xf32>
      %cst_41 = arith.constant 1.600000e+01 : f32
      %84 = vector.broadcast %cst_41 : f32 to vector<32x1xf32>
      %85 = arith.divf %83, %84 : vector<32x1xf32>
      %cst_42 = arith.constant 9.99999974E-6 : f32
      %86 = vector.broadcast %cst_42 : f32 to vector<32x1xf32>
      %87 = arith.addf %85, %86 : vector<32x1xf32>
      %88 = math.rsqrt %87 : vector<32x1xf32>
      %89 = vector.broadcast %88 : vector<32x1xf32> to vector<32x16xf32>
      %90 = arith.mulf %80, %89 : vector<32x16xf32>
      %91 = vector.broadcast %71 : vector<1x16xf32> to vector<32x16xf32>
      %92 = arith.mulf %90, %91 : vector<32x16xf32>
      %93 = vector.broadcast %74 : vector<1x16xf32> to vector<32x16xf32>
      %94 = arith.addf %92, %93 : vector<32x16xf32>
      %95 = arith.truncf %94 : vector<32x16xf32> to vector<32x16xbf16>
      %96 = arith.index_cast %arg21 : i32 to index
      %c0_43 = arith.constant 0 : index
      %c0_44 = arith.constant 0 : index
      %97 = vector.load %arg6[%96, %c0_43, %c0_44] : memref<2x16x16xbf16, #tpu.memory_space<vmem>>, vector<1x16x16xbf16>
      %98 = vector.shape_cast %97 : vector<1x16x16xbf16> to vector<16x16xbf16>
      %cst_45 = arith.constant dense<0.000000e+00> : vector<32x16xf32>
      %99 = tpu.matmul %95, %98, %cst_45 {dimension_numbers = #tpu.dot_dimension_numbers<[1], [0], [0], [1], [0, 0, 1, 1], [], []>} : vector<32x16xbf16>, vector<16x16xbf16>, vector<32x16xf32> -> vector<32x16xf32>
      %100 = arith.index_cast %arg21 : i32 to index
      %c0_46 = arith.constant 0 : index
      %c0_47 = arith.constant 0 : index
      %101 = vector.load %arg7[%100, %c0_46, %c0_47] : memref<2x1x16xf32, #tpu.memory_space<vmem>>, vector<1x1x16xf32>
      %102 = vector.shape_cast %101 : vector<1x1x16xf32> to vector<1x16xf32>
      %103 = vector.broadcast %102 : vector<1x16xf32> to vector<32x16xf32>
      %104 = arith.addf %99, %103 : vector<32x16xf32>
      %cst_48 = arith.constant 5.000000e-01 : f32
      %105 = vector.broadcast %cst_48 : f32 to vector<32x16xf32>
      %106 = arith.mulf %105, %104 : vector<32x16xf32>
      %cst_49 = arith.constant 0.707106769 : f32
      %107 = vector.broadcast %cst_49 : f32 to vector<32x16xf32>
      %108 = arith.mulf %104, %107 : vector<32x16xf32>
      %cst_50 = arith.constant 0.000000e+00 : f32
      %109 = vector.broadcast %cst_50 : f32 to vector<32x16xf32>
      %110 = arith.cmpf oge, %108, %109 : vector<32x16xf32>
      %cst_51 = arith.constant 1.000000e+00 : f32
      %cst_52 = arith.constant -1.000000e+00 : f32
      %111 = vector.broadcast %cst_51 : f32 to vector<32x16xf32>
      %112 = vector.broadcast %cst_52 : f32 to vector<32x16xf32>
      %113 = arith.select %110, %111, %112 : vector<32x16xi1>, vector<32x16xf32>
      %114 = math.absf %108 : vector<32x16xf32>
      %cst_53 = arith.constant 0.327591091 : f32
      %115 = vector.broadcast %cst_53 : f32 to vector<32x16xf32>
      %116 = arith.mulf %115, %114 : vector<32x16xf32>
      %cst_54 = arith.constant 1.000000e+00 : f32
      %117 = vector.broadcast %cst_54 : f32 to vector<32x16xf32>
      %118 = arith.addf %117, %116 : vector<32x16xf32>
      %119 = tpu.reciprocal %118 : vector<32x16xf32> -> vector<32x16xf32>
      %cst_55 = arith.constant 1.06140542 : f32
      %120 = vector.broadcast %cst_55 : f32 to vector<32x16xf32>
      %121 = arith.mulf %120, %119 : vector<32x16xf32>
      %cst_56 = arith.constant -1.45315206 : f32
      %122 = vector.broadcast %cst_56 : f32 to vector<32x16xf32>
      %123 = arith.addf %121, %122 : vector<32x16xf32>
      %124 = arith.mulf %123, %119 : vector<32x16xf32>
      %cst_57 = arith.constant 1.42141378 : f32
      %125 = vector.broadcast %cst_57 : f32 to vector<32x16xf32>
      %126 = arith.addf %124, %125 : vector<32x16xf32>
      %127 = arith.mulf %126, %119 : vector<32x16xf32>
      %cst_58 = arith.constant -0.284496725 : f32
      %128 = vector.broadcast %cst_58 : f32 to vector<32x16xf32>
      %129 = arith.addf %127, %128 : vector<32x16xf32>
      %130 = arith.mulf %129, %119 : vector<32x16xf32>
      %cst_59 = arith.constant 0.254829586 : f32
      %131 = vector.broadcast %cst_59 : f32 to vector<32x16xf32>
      %132 = arith.addf %130, %131 : vector<32x16xf32>
      %133 = arith.mulf %132, %119 : vector<32x16xf32>
      %cst_60 = arith.constant 0.000000e+00 : f32
      %134 = vector.broadcast %cst_60 : f32 to vector<32x16xf32>
      %135 = arith.subf %134, %114 : vector<32x16xf32>
      %136 = arith.mulf %135, %114 : vector<32x16xf32>
      %137 = math.exp %136 : vector<32x16xf32>
      %138 = arith.mulf %133, %137 : vector<32x16xf32>
      %cst_61 = arith.constant 1.000000e+00 : f32
      %139 = vector.broadcast %cst_61 : f32 to vector<32x16xf32>
      %140 = arith.subf %139, %138 : vector<32x16xf32>
      %141 = arith.mulf %113, %140 : vector<32x16xf32>
      %cst_62 = arith.constant 1.000000e+00 : f32
      %142 = vector.broadcast %cst_62 : f32 to vector<32x16xf32>
      %143 = arith.addf %142, %141 : vector<32x16xf32>
      %144 = arith.mulf %106, %143 : vector<32x16xf32>
      %145 = arith.truncf %144 : vector<32x16xf32> to vector<32x16xbf16>
      %146 = arith.index_cast %arg21 : i32 to index
      %c0_63 = arith.constant 0 : index
      %c0_64 = arith.constant 0 : index
      %147 = vector.load %arg8[%146, %c0_63, %c0_64] : memref<2x16x16xbf16, #tpu.memory_space<vmem>>, vector<1x16x16xbf16>
      %148 = vector.shape_cast %147 : vector<1x16x16xbf16> to vector<16x16xbf16>
      %cst_65 = arith.constant dense<0.000000e+00> : vector<32x16xf32>
      %149 = tpu.matmul %145, %148, %cst_65 {dimension_numbers = #tpu.dot_dimension_numbers<[1], [0], [0], [1], [0, 0, 1, 1], [], []>} : vector<32x16xbf16>, vector<16x16xbf16>, vector<32x16xf32> -> vector<32x16xf32>
      %150 = arith.index_cast %arg21 : i32 to index
      %c0_66 = arith.constant 0 : index
      %c0_67 = arith.constant 0 : index
      %151 = vector.load %arg9[%150, %c0_66, %c0_67] : memref<2x1x16xf32, #tpu.memory_space<vmem>>, vector<1x1x16xf32>
      %152 = vector.shape_cast %151 : vector<1x1x16xf32> to vector<1x16xf32>
      %153 = vector.broadcast %152 : vector<1x16xf32> to vector<32x16xf32>
      %154 = arith.addf %149, %153 : vector<32x16xf32>
      %155 = vector.shape_cast %154 : vector<32x16xf32> to vector<1x32x16xf32>
      %156 = tpu.transpose %155, [0, 2, 1] : vector<1x32x16xf32> -> vector<1x16x32xf32>
      %157 = arith.addf %arg22, %156 : vector<1x16x32xf32>
      %158 = vector.shape_cast %157 : vector<1x16x32xf32> to vector<16x32xf32>
      %159 = arith.index_cast %arg21 : i32 to index
      %c0_68 = arith.constant 0 : index
      %c0_69 = arith.constant 0 : index
      %160 = vector.load %arg10[%159, %c0_68, %c0_69] : memref<2x1x32xf32, #tpu.memory_space<vmem>>, vector<1x1x32xf32>
      %161 = vector.shape_cast %160 : vector<1x1x32xf32> to vector<1x32xf32>
      %162 = arith.index_cast %arg21 : i32 to index
      %c0_70 = arith.constant 0 : index
      %c0_71 = arith.constant 0 : index
      %163 = vector.load %arg11[%162, %c0_70, %c0_71] : memref<2x1x32xf32, #tpu.memory_space<vmem>>, vector<1x1x32xf32>
      %164 = vector.shape_cast %163 : vector<1x1x32xf32> to vector<1x32xf32>
      %cst_72 = arith.constant dense<0.000000e+00> : vector<16xf32>
      %165 = vector.multi_reduction <add>, %158, %cst_72 [1] : vector<16x32xf32> to vector<16xf32>
      %166 = vector.shape_cast %165 : vector<16xf32> to vector<16x1xf32>
      %cst_73 = arith.constant 3.200000e+01 : f32
      %167 = vector.broadcast %cst_73 : f32 to vector<16x1xf32>
      %168 = arith.divf %166, %167 : vector<16x1xf32>
      %169 = vector.broadcast %168 : vector<16x1xf32> to vector<16x32xf32>
      %170 = arith.subf %158, %169 : vector<16x32xf32>
      %171 = arith.mulf %170, %170 : vector<16x32xf32>
      %cst_74 = arith.constant dense<0.000000e+00> : vector<16xf32>
      %172 = vector.multi_reduction <add>, %171, %cst_74 [1] : vector<16x32xf32> to vector<16xf32>
      %173 = vector.shape_cast %172 : vector<16xf32> to vector<16x1xf32>
      %cst_75 = arith.constant 3.200000e+01 : f32
      %174 = vector.broadcast %cst_75 : f32 to vector<16x1xf32>
      %175 = arith.divf %173, %174 : vector<16x1xf32>
      %cst_76 = arith.constant 9.99999974E-6 : f32
      %176 = vector.broadcast %cst_76 : f32 to vector<16x1xf32>
      %177 = arith.addf %175, %176 : vector<16x1xf32>
      %178 = math.rsqrt %177 : vector<16x1xf32>
      %179 = vector.broadcast %178 : vector<16x1xf32> to vector<16x32xf32>
      %180 = arith.mulf %170, %179 : vector<16x32xf32>
      %181 = vector.broadcast %161 : vector<1x32xf32> to vector<16x32xf32>
      %182 = arith.mulf %180, %181 : vector<16x32xf32>
      %183 = vector.broadcast %164 : vector<1x32xf32> to vector<16x32xf32>
      %184 = arith.addf %182, %183 : vector<16x32xf32>
      %185 = arith.truncf %184 : vector<16x32xf32> to vector<16x32xbf16>
      %186 = arith.index_cast %arg21 : i32 to index
      %c0_77 = arith.constant 0 : index
      %c0_78 = arith.constant 0 : index
      %187 = vector.load %arg12[%186, %c0_77, %c0_78] : memref<2x32x32xbf16, #tpu.memory_space<vmem>>, vector<1x32x32xbf16>
      %188 = vector.shape_cast %187 : vector<1x32x32xbf16> to vector<32x32xbf16>
      %cst_79 = arith.constant dense<0.000000e+00> : vector<16x32xf32>
      %189 = tpu.matmul %185, %188, %cst_79 {dimension_numbers = #tpu.dot_dimension_numbers<[1], [0], [0], [1], [0, 0, 1, 1], [], []>} : vector<16x32xbf16>, vector<32x32xbf16>, vector<16x32xf32> -> vector<16x32xf32>
      %190 = arith.index_cast %arg21 : i32 to index
      %c0_80 = arith.constant 0 : index
      %c0_81 = arith.constant 0 : index
      %191 = vector.load %arg13[%190, %c0_80, %c0_81] : memref<2x1x32xf32, #tpu.memory_space<vmem>>, vector<1x1x32xf32>
      %192 = vector.shape_cast %191 : vector<1x1x32xf32> to vector<1x32xf32>
      %193 = vector.broadcast %192 : vector<1x32xf32> to vector<16x32xf32>
      %194 = arith.addf %189, %193 : vector<16x32xf32>
      %cst_82 = arith.constant 5.000000e-01 : f32
      %195 = vector.broadcast %cst_82 : f32 to vector<16x32xf32>
      %196 = arith.mulf %195, %194 : vector<16x32xf32>
      %cst_83 = arith.constant 0.707106769 : f32
      %197 = vector.broadcast %cst_83 : f32 to vector<16x32xf32>
      %198 = arith.mulf %194, %197 : vector<16x32xf32>
      %cst_84 = arith.constant 0.000000e+00 : f32
      %199 = vector.broadcast %cst_84 : f32 to vector<16x32xf32>
      %200 = arith.cmpf oge, %198, %199 : vector<16x32xf32>
      %cst_85 = arith.constant 1.000000e+00 : f32
      %cst_86 = arith.constant -1.000000e+00 : f32
      %201 = vector.broadcast %cst_85 : f32 to vector<16x32xf32>
      %202 = vector.broadcast %cst_86 : f32 to vector<16x32xf32>
      %203 = arith.select %200, %201, %202 : vector<16x32xi1>, vector<16x32xf32>
      %204 = math.absf %198 : vector<16x32xf32>
      %cst_87 = arith.constant 0.327591091 : f32
      %205 = vector.broadcast %cst_87 : f32 to vector<16x32xf32>
      %206 = arith.mulf %205, %204 : vector<16x32xf32>
      %cst_88 = arith.constant 1.000000e+00 : f32
      %207 = vector.broadcast %cst_88 : f32 to vector<16x32xf32>
      %208 = arith.addf %207, %206 : vector<16x32xf32>
      %209 = tpu.reciprocal %208 : vector<16x32xf32> -> vector<16x32xf32>
      %cst_89 = arith.constant 1.06140542 : f32
      %210 = vector.broadcast %cst_89 : f32 to vector<16x32xf32>
      %211 = arith.mulf %210, %209 : vector<16x32xf32>
      %cst_90 = arith.constant -1.45315206 : f32
      %212 = vector.broadcast %cst_90 : f32 to vector<16x32xf32>
      %213 = arith.addf %211, %212 : vector<16x32xf32>
      %214 = arith.mulf %213, %209 : vector<16x32xf32>
      %cst_91 = arith.constant 1.42141378 : f32
      %215 = vector.broadcast %cst_91 : f32 to vector<16x32xf32>
      %216 = arith.addf %214, %215 : vector<16x32xf32>
      %217 = arith.mulf %216, %209 : vector<16x32xf32>
      %cst_92 = arith.constant -0.284496725 : f32
      %218 = vector.broadcast %cst_92 : f32 to vector<16x32xf32>
      %219 = arith.addf %217, %218 : vector<16x32xf32>
      %220 = arith.mulf %219, %209 : vector<16x32xf32>
      %cst_93 = arith.constant 0.254829586 : f32
      %221 = vector.broadcast %cst_93 : f32 to vector<16x32xf32>
      %222 = arith.addf %220, %221 : vector<16x32xf32>
      %223 = arith.mulf %222, %209 : vector<16x32xf32>
      %cst_94 = arith.constant 0.000000e+00 : f32
      %224 = vector.broadcast %cst_94 : f32 to vector<16x32xf32>
      %225 = arith.subf %224, %204 : vector<16x32xf32>
      %226 = arith.mulf %225, %204 : vector<16x32xf32>
      %227 = math.exp %226 : vector<16x32xf32>
      %228 = arith.mulf %223, %227 : vector<16x32xf32>
      %cst_95 = arith.constant 1.000000e+00 : f32
      %229 = vector.broadcast %cst_95 : f32 to vector<16x32xf32>
      %230 = arith.subf %229, %228 : vector<16x32xf32>
      %231 = arith.mulf %203, %230 : vector<16x32xf32>
      %cst_96 = arith.constant 1.000000e+00 : f32
      %232 = vector.broadcast %cst_96 : f32 to vector<16x32xf32>
      %233 = arith.addf %232, %231 : vector<16x32xf32>
      %234 = arith.mulf %196, %233 : vector<16x32xf32>
      %235 = arith.truncf %234 : vector<16x32xf32> to vector<16x32xbf16>
      %236 = arith.index_cast %arg21 : i32 to index
      %c0_97 = arith.constant 0 : index
      %c0_98 = arith.constant 0 : index
      %237 = vector.load %arg14[%236, %c0_97, %c0_98] : memref<2x32x32xbf16, #tpu.memory_space<vmem>>, vector<1x32x32xbf16>
      %238 = vector.shape_cast %237 : vector<1x32x32xbf16> to vector<32x32xbf16>
      %cst_99 = arith.constant dense<0.000000e+00> : vector<16x32xf32>
      %239 = tpu.matmul %235, %238, %cst_99 {dimension_numbers = #tpu.dot_dimension_numbers<[1], [0], [0], [1], [0, 0, 1, 1], [], []>} : vector<16x32xbf16>, vector<32x32xbf16>, vector<16x32xf32> -> vector<16x32xf32>
      %240 = arith.index_cast %arg21 : i32 to index
      %c0_100 = arith.constant 0 : index
      %c0_101 = arith.constant 0 : index
      %241 = vector.load %arg15[%240, %c0_100, %c0_101] : memref<2x1x32xf32, #tpu.memory_space<vmem>>, vector<1x1x32xf32>
      %242 = vector.shape_cast %241 : vector<1x1x32xf32> to vector<1x32xf32>
      %243 = vector.broadcast %242 : vector<1x32xf32> to vector<16x32xf32>
      %244 = arith.addf %239, %243 : vector<16x32xf32>
      %245 = vector.shape_cast %244 : vector<16x32xf32> to vector<1x16x32xf32>
      %246 = arith.addf %157, %245 : vector<1x16x32xf32>
      scf.yield %246 : vector<1x16x32xf32>
    }
    %c2_i32_7 = arith.constant 2 : i32
    %cst_8 = arith.constant dense<0.000000e+00> : vector<1x16xf32>
    %11 = vector.multi_reduction <add>, %10, %cst_8 [2] : vector<1x16x32xf32> to vector<1x16xf32>
    %12 = vector.shape_cast %11 : vector<1x16xf32> to vector<1x16x1xf32>
    %cst_9 = arith.constant 3.200000e+01 : f32
    %13 = vector.broadcast %cst_9 : f32 to vector<1x16x1xf32>
    %14 = arith.divf %12, %13 : vector<1x16x1xf32>
    %cst_10 = arith.constant dense<0.000000e+00> : vector<1x1xf32>
    %15 = vector.multi_reduction <add>, %14, %cst_10 [1] : vector<1x16x1xf32> to vector<1x1xf32>
    %16 = vector.shape_cast %15 : vector<1x1xf32> to vector<1x1x1xf32>
    %cst_11 = arith.constant 1.600000e+01 : f32
    %17 = vector.broadcast %cst_11 : f32 to vector<1x1x1xf32>
    %18 = arith.divf %16, %17 : vector<1x1x1xf32>
    %19 = vector.broadcast %18 : vector<1x1x1xf32> to vector<1x16x32xf32>
    %20 = arith.subf %10, %19 : vector<1x16x32xf32>
    %21 = arith.mulf %20, %20 : vector<1x16x32xf32>
    %cst_12 = arith.constant dense<0.000000e+00> : vector<1x16xf32>
    %22 = vector.multi_reduction <add>, %21, %cst_12 [2] : vector<1x16x32xf32> to vector<1x16xf32>
    %23 = vector.shape_cast %22 : vector<1x16xf32> to vector<1x16x1xf32>
    %cst_13 = arith.constant 3.200000e+01 : f32
    %24 = vector.broadcast %cst_13 : f32 to vector<1x16x1xf32>
    %25 = arith.divf %23, %24 : vector<1x16x1xf32>
    %cst_14 = arith.constant dense<0.000000e+00> : vector<1x1xf32>
    %26 = vector.multi_reduction <add>, %25, %cst_14 [1] : vector<1x16x1xf32> to vector<1x1xf32>
    %27 = vector.shape_cast %26 : vector<1x1xf32> to vector<1x1x1xf32>
    %cst_15 = arith.constant 1.600000e+01 : f32
    %28 = vector.broadcast %cst_15 : f32 to vector<1x1x1xf32>
    %29 = arith.divf %27, %28 : vector<1x1x1xf32>
    %cst_16 = arith.constant 9.99999974E-6 : f32
    %30 = vector.broadcast %cst_16 : f32 to vector<1x1x1xf32>
    %31 = arith.addf %29, %30 : vector<1x1x1xf32>
    %32 = math.rsqrt %31 : vector<1x1x1xf32>
    %33 = vector.broadcast %32 : vector<1x1x1xf32> to vector<1x16x32xf32>
    %34 = arith.mulf %20, %33 : vector<1x16x32xf32>
    %c0_17 = arith.constant 0 : index
    %c0_18 = arith.constant 0 : index
    %35 = vector.load %arg16[%c0_17, %c0_18] : memref<16x32xf32, #tpu.memory_space<vmem>>, vector<16x32xf32>
    %36 = vector.shape_cast %35 : vector<16x32xf32> to vector<1x16x32xf32>
    %37 = arith.mulf %34, %36 : vector<1x16x32xf32>
    %c0_19 = arith.constant 0 : index
    %c0_20 = arith.constant 0 : index
    %38 = vector.load %arg17[%c0_19, %c0_20] : memref<16x32xf32, #tpu.memory_space<vmem>>, vector<16x32xf32>
    %39 = vector.shape_cast %38 : vector<16x32xf32> to vector<1x16x32xf32>
    %40 = arith.addf %37, %39 : vector<1x16x32xf32>
    %cst_21 = arith.constant dense<0.000000e+00> : vector<1x16xf32>
    %41 = vector.multi_reduction <add>, %40, %cst_21 [2] : vector<1x16x32xf32> to vector<1x16xf32>
    %cst_22 = arith.constant 3.200000e+01 : f32
    %42 = vector.broadcast %cst_22 : f32 to vector<1x16xf32>
    %43 = arith.divf %41, %42 : vector<1x16xf32>
    %44 = arith.truncf %43 : vector<1x16xf32> to vector<1x16xbf16>
    %c0_23 = arith.constant 0 : index
    %c0_24 = arith.constant 0 : index
    %45 = vector.load %arg18[%c0_23, %c0_24] : memref<16x128xbf16, #tpu.memory_space<vmem>>, vector<16x128xbf16>
    %cst_25 = arith.constant dense<0.000000e+00> : vector<1x128xf32>
    %46 = tpu.matmul %44, %45, %cst_25 {dimension_numbers = #tpu.dot_dimension_numbers<[1], [0], [0], [1], [0, 0, 1, 1], [], []>} : vector<1x16xbf16>, vector<16x128xbf16>, vector<1x128xf32> -> vector<1x128xf32>
    %c0_26 = arith.constant 0 : index
    %c0_27 = arith.constant 0 : index
    %47 = vector.load %arg19[%c0_26, %c0_27] : memref<1x128xf32, #tpu.memory_space<vmem>>, vector<1x128xf32>
    %48 = arith.addf %46, %47 : vector<1x128xf32>
    %49 = tpu.iota {dimensions = array<i32: 1>} : vector<1x128xi32>
    %c10_i32 = arith.constant 10 : i32
    %50 = vector.broadcast %c10_i32 : i32 to vector<1x128xi32>
    %51 = arith.cmpi slt, %49, %50 : vector<1x128xi32>
    %cst_28 = arith.constant -1.000000e+30 : f32
    %52 = vector.broadcast %cst_28 : f32 to vector<1x128xf32>
    %53 = arith.select %51, %48, %52 : vector<1x128xi1>, vector<1x128xf32>
    %cst_29 = arith.constant dense<0xFF800000> : vector<1xf32>
    %54 = vector.multi_reduction <maximumf>, %53, %cst_29 [1] : vector<1x128xf32> to vector<1xf32>
    %55 = vector.shape_cast %54 : vector<1xf32> to vector<1x1xf32>
    %56 = vector.broadcast %55 : vector<1x1xf32> to vector<1x128xf32>
    %57 = arith.subf %53, %56 : vector<1x128xf32>
    %58 = math.exp %57 : vector<1x128xf32>
    %cst_30 = arith.constant dense<0.000000e+00> : vector<1xf32>
    %59 = vector.multi_reduction <add>, %58, %cst_30 [1] : vector<1x128xf32> to vector<1xf32>
    %60 = vector.shape_cast %59 : vector<1xf32> to vector<1x1xf32>
    %61 = tpu.reciprocal %60 {approx = true} : vector<1x1xf32> -> vector<1x1xf32>
    %62 = vector.broadcast %61 : vector<1x1xf32> to vector<1x128xf32>
    %63 = arith.mulf %58, %62 : vector<1x128xf32>
    %c0_31 = arith.constant 0 : index
    %c0_32 = arith.constant 0 : index
    %c0_33 = arith.constant 0 : index
    %64 = vector.load %arg20[%c0_31, %c0_32, %c0_33] : memref<1x1x128xf32, #tpu.memory_space<vmem>>, vector<1x1x128xf32>
    %65 = vector.shape_cast %64 : vector<1x1x128xf32> to vector<1x128xf32>
    %66 = vector.shape_cast %63 : vector<1x128xf32> to vector<1x1x128xf32>
    tpu.vector_store %arg20[%c0_31, %c0_32, %c0_33], %66 {strides = array<i32>} : memref<1x1x128xf32, #tpu.memory_space<vmem>>, vector<1x1x128xf32>,
    return
  }
  func.func @transform_0(%arg0: i32) -> (i32, i32, i32, i32) {
    %c0_i32 = arith.constant 0 : i32
    %c0_i32_0 = arith.constant 0 : i32
    %c0_i32_1 = arith.constant 0 : i32
    %c0_i32_2 = arith.constant 0 : i32
    return %arg0, %c0_i32, %c0_i32_0, %c0_i32_1 : i32, i32, i32, i32
  }
  func.func @transform_1(%arg0: i32) -> (i32, i32) {
    %c0_i32 = arith.constant 0 : i32
    %c0_i32_0 = arith.constant 0 : i32
    %c0_i32_1 = arith.constant 0 : i32
    return %c0_i32, %c0_i32_0 : i32, i32
  }
  func.func @transform_2(%arg0: i32) -> (i32, i32) {
    %c0_i32 = arith.constant 0 : i32
    %c0_i32_0 = arith.constant 0 : i32
    %c0_i32_1 = arith.constant 0 : i32
    return %c0_i32, %c0_i32_0 : i32, i32
  }
  func.func @transform_3(%arg0: i32) -> (i32, i32, i32) {
    %c0_i32 = arith.constant 0 : i32
    %c0_i32_0 = arith.constant 0 : i32
    %c0_i32_1 = arith.constant 0 : i32
    %c0_i32_2 = arith.constant 0 : i32
    return %c0_i32, %c0_i32_0, %c0_i32_1 : i32, i32, i32
  }
  func.func @transform_4(%arg0: i32) -> (i32, i32, i32) {
    %c0_i32 = arith.constant 0 : i32
    %c0_i32_0 = arith.constant 0 : i32
    %c0_i32_1 = arith.constant 0 : i32
    %c0_i32_2 = arith.constant 0 : i32
    return %c0_i32, %c0_i32_0, %c0_i32_1 : i32, i32, i32
  }
  func.func @transform_5(%arg0: i32) -> (i32, i32, i32) {
    %c0_i32 = arith.constant 0 : i32
    %c0_i32_0 = arith.constant 0 : i32
    %c0_i32_1 = arith.constant 0 : i32
    %c0_i32_2 = arith.constant 0 : i32
    return %c0_i32, %c0_i32_0, %c0_i32_1 : i32, i32, i32
  }
  func.func @transform_6(%arg0: i32) -> (i32, i32, i32) {
    %c0_i32 = arith.constant 0 : i32
    %c0_i32_0 = arith.constant 0 : i32
    %c0_i32_1 = arith.constant 0 : i32
    %c0_i32_2 = arith.constant 0 : i32
    return %c0_i32, %c0_i32_0, %c0_i32_1 : i32, i32, i32
  }
  func.func @transform_7(%arg0: i32) -> (i32, i32, i32) {
    %c0_i32 = arith.constant 0 : i32
    %c0_i32_0 = arith.constant 0 : i32
    %c0_i32_1 = arith.constant 0 : i32
    %c0_i32_2 = arith.constant 0 : i32
    return %c0_i32, %c0_i32_0, %c0_i32_1 : i32, i32, i32
  }
  func.func @transform_8(%arg0: i32) -> (i32, i32, i32) {
    %c0_i32 = arith.constant 0 : i32
    %c0_i32_0 = arith.constant 0 : i32
    %c0_i32_1 = arith.constant 0 : i32
    %c0_i32_2 = arith.constant 0 : i32
    return %c0_i32, %c0_i32_0, %c0_i32_1 : i32, i32, i32
  }
  func.func @transform_9(%arg0: i32) -> (i32, i32, i32) {
    %c0_i32 = arith.constant 0 : i32
    %c0_i32_0 = arith.constant 0 : i32
    %c0_i32_1 = arith.constant 0 : i32
    %c0_i32_2 = arith.constant 0 : i32
    return %c0_i32, %c0_i32_0, %c0_i32_1 : i32, i32, i32
  }
  func.func @transform_10(%arg0: i32) -> (i32, i32, i32) {
    %c0_i32 = arith.constant 0 : i32
    %c0_i32_0 = arith.constant 0 : i32
    %c0_i32_1 = arith.constant 0 : i32
    %c0_i32_2 = arith.constant 0 : i32
    return %c0_i32, %c0_i32_0, %c0_i32_1 : i32, i32, i32
  }
  func.func @transform_11(%arg0: i32) -> (i32, i32, i32) {
    %c0_i32 = arith.constant 0 : i32
    %c0_i32_0 = arith.constant 0 : i32
    %c0_i32_1 = arith.constant 0 : i32
    %c0_i32_2 = arith.constant 0 : i32
    return %c0_i32, %c0_i32_0, %c0_i32_1 : i32, i32, i32
  }
  func.func @transform_12(%arg0: i32) -> (i32, i32, i32) {
    %c0_i32 = arith.constant 0 : i32
    %c0_i32_0 = arith.constant 0 : i32
    %c0_i32_1 = arith.constant 0 : i32
    %c0_i32_2 = arith.constant 0 : i32
    return %c0_i32, %c0_i32_0, %c0_i32_1 : i32, i32, i32
  }
  func.func @transform_13(%arg0: i32) -> (i32, i32, i32) {
    %c0_i32 = arith.constant 0 : i32
    %c0_i32_0 = arith.constant 0 : i32
    %c0_i32_1 = arith.constant 0 : i32
    %c0_i32_2 = arith.constant 0 : i32
    return %c0_i32, %c0_i32_0, %c0_i32_1 : i32, i32, i32
  }
  func.func @transform_14(%arg0: i32) -> (i32, i32, i32) {
    %c0_i32 = arith.constant 0 : i32
    %c0_i32_0 = arith.constant 0 : i32
    %c0_i32_1 = arith.constant 0 : i32
    %c0_i32_2 = arith.constant 0 : i32
    return %c0_i32, %c0_i32_0, %c0_i32_1 : i32, i32, i32
  }
  func.func @transform_15(%arg0: i32) -> (i32, i32) {
    %c0_i32 = arith.constant 0 : i32
    %c0_i32_0 = arith.constant 0 : i32
    %c0_i32_1 = arith.constant 0 : i32
    return %c0_i32, %c0_i32_0 : i32, i32
  }
  func.func @transform_16(%arg0: i32) -> (i32, i32) {
    %c0_i32 = arith.constant 0 : i32
    %c0_i32_0 = arith.constant 0 : i32
    %c0_i32_1 = arith.constant 0 : i32
    return %c0_i32, %c0_i32_0 : i32, i32
  }
  func.func @transform_17(%arg0: i32) -> (i32, i32) {
    %c0_i32 = arith.constant 0 : i32
    %c0_i32_0 = arith.constant 0 : i32
    %c0_i32_1 = arith.constant 0 : i32
    return %c0_i32, %c0_i32_0 : i32, i32
  }
  func.func @transform_18(%arg0: i32) -> (i32, i32) {
    %c0_i32 = arith.constant 0 : i32
    %c0_i32_0 = arith.constant 0 : i32
    %c0_i32_1 = arith.constant 0 : i32
    return %c0_i32, %c0_i32_0 : i32, i32
  }
  func.func @transform_19(%arg0: i32) -> (i32, i32, i32) {
    %c0_i32 = arith.constant 0 : i32
    %c0_i32_0 = arith.constant 0 : i32
    %c0_i32_1 = arith.constant 0 : i32
    return %arg0, %c0_i32, %c0_i32_0 : i32, i32, i32
  }
}

</mosaic_0001>

<llo_original>
// kernel: mlp_mixer_forward.1
$region0: #{mlp_mixer_forward.1}
  #allocation0 [shape = 'u32[]', space=smem, size = 0x4, offset = 0x4, fixed_abs, tag = 'smem constant byte address 0x4 - core index']
  #allocation1 [shape = 'u32[72,128]{1,0:T(1,128)}', space=vmem, size = 0x9000, scoped, tag = 'internal scratch']
  %s0 = inlined_call_operand.vmem [shape: bf16[2,1,16,48], index: 0, kind: input, shape index: {}]
  %s1 = inlined_call_operand.vmem [shape: bf16[48,32], index: 1, kind: input, shape index: {}]
  %s2 = inlined_call_operand.vmem [shape: f32[1,32], index: 2, kind: input, shape index: {}]
  %s3 = inlined_call_operand.vmem [shape: f32[2,1,16], index: 3, kind: input, shape index: {}]
  %s4 = inlined_call_operand.vmem [shape: f32[2,1,16], index: 4, kind: input, shape index: {}]
  %s5 = inlined_call_operand.vmem [shape: bf16[2,16,16], index: 5, kind: input, shape index: {}]
  %s6 = inlined_call_operand.vmem [shape: f32[2,1,16], index: 6, kind: input, shape index: {}]
  %s7 = inlined_call_operand.vmem [shape: bf16[2,16,16], index: 7, kind: input, shape index: {}]
  %s8 = inlined_call_operand.vmem [shape: f32[2,1,16], index: 8, kind: input, shape index: {}]
  %s9 = inlined_call_operand.vmem [shape: f32[2,1,32], index: 9, kind: input, shape index: {}]
  %s10 = inlined_call_operand.vmem [shape: f32[2,1,32], index: 10, kind: input, shape index: {}]
  %s11 = inlined_call_operand.vmem [shape: bf16[2,32,32], index: 11, kind: input, shape index: {}]
  %s12 = inlined_call_operand.vmem [shape: f32[2,1,32], index: 12, kind: input, shape index: {}]
  %s13 = inlined_call_operand.vmem [shape: bf16[2,32,32], index: 13, kind: input, shape index: {}]
  %s14 = inlined_call_operand.vmem [shape: f32[2,1,32], index: 14, kind: input, shape index: {}]
  %s15 = inlined_call_operand.vmem [shape: f32[16,32], index: 15, kind: input, shape index: {}]
  %s16 = inlined_call_operand.vmem [shape: f32[16,32], index: 16, kind: input, shape index: {}]
  %s17 = inlined_call_operand.vmem [shape: bf16[16,128], index: 17, kind: input, shape index: {}]
  %s18 = inlined_call_operand.vmem [shape: f32[1,128], index: 18, kind: input, shape index: {}]
  %s19 = inlined_call_operand.hbm [shape: f32[2,1,128], index: 19, kind: output, shape index: {}]
  %s20 = sld [smem:[#allocation0]]
  $region116: #{mlp_mixer_forward.1} parent=0
    _
  %s22 = ssub.s32 1, %s20
  %s23 = scalar_select 0, %s22, %s20
  $region1: #{mlp_mixer_forward.1} parent=0
    #allocation2 [shape = 'u8[1024]{0}', space=vmem, size = 0x400, scoped, tag = 'output window, operand 0']
    #allocation3 [shape = 's32[2]{0}', space=sflag, size = 0x8, scoped, tag = 'scoped memory for mlp_mixer_forward.1']
    %24 = vsyncpa [#allocation3], 0
    %s25 = scalar_lea.sflag [#allocation3], 1
    %26 = vsyncpa %s25, 0
    loop: start=0, step=1, limit=4
    $region2: #{mlp_mixer_forward.1} parent=1 // loop_pre_header
      _
    $region3: #{mlp_mixer_forward.1} parent=1 // loop_header
      %s28 = sphi 0, %s32
      %p29 = scmp.ge.s32.totalorder %s28, 4
      %s38 = sphi 0, %s40
      %s41 = sphi 0, %s38
      %s42 = sphi 0, %s41
      %s58 = sphi 0, %s42
      %s62 = sphi 0, %s62
      %s64 = sphi 0, %s62
      %s65 = sphi 0, %s64
      %s79 = sphi 0, %s65
      %s83 = sphi 0, %s83
      %s85 = sphi 0, %s83
      %s86 = sphi 0, %s85
      %s100 = sphi 0, %s86
      %s104 = sphi 0, %s104
      %s106 = sphi 0, %s104
      %s107 = sphi 0, %s106
      %s121 = sphi 0, %s107
      %s125 = sphi 0, %s125
      %s127 = sphi 0, %s125
      %s128 = sphi 0, %s127
      %s142 = sphi 0, %s128
      %s146 = sphi 0, %s146
      %s148 = sphi 0, %s146
      %s149 = sphi 0, %s148
      %s163 = sphi 0, %s149
      %s167 = sphi 0, %s167
      %s169 = sphi 0, %s167
      %s170 = sphi 0, %s169
      %s184 = sphi 0, %s170
      %s188 = sphi 0, %s188
      %s190 = sphi 0, %s188
      %s191 = sphi 0, %s190
      %s205 = sphi 0, %s191
      %s209 = sphi 0, %s209
      %s211 = sphi 0, %s209
      %s212 = sphi 0, %s211
      %s226 = sphi 0, %s212
      %s230 = sphi 0, %s230
      %s232 = sphi 0, %s230
      %s233 = sphi 0, %s232
      %s247 = sphi 0, %s233
      %s251 = sphi 0, %s251
      %s253 = sphi 0, %s251
      %s254 = sphi 0, %s253
      %s268 = sphi 0, %s254
      %s272 = sphi 0, %s272
      %s274 = sphi 0, %s272
      %s275 = sphi 0, %s274
      %s289 = sphi 0, %s275
      %s293 = sphi 0, %s293
      %s295 = sphi 0, %s293
      %s296 = sphi 0, %s295
      %s310 = sphi 0, %s296
      %s314 = sphi 0, %s314
      %s316 = sphi 0, %s314
      %s317 = sphi 0, %s316
      %s331 = sphi 0, %s317
      %s335 = sphi 0, %s335
      %s337 = sphi 0, %s335
      %s338 = sphi 0, %s337
      %s352 = sphi 0, %s338
      %s356 = sphi 0, %s356
      %s358 = sphi 0, %s356
      %s359 = sphi 0, %s358
      %s373 = sphi 0, %s359
      %s377 = sphi 0, %s377
      %s379 = sphi 0, %s377
      %s380 = sphi 0, %s379
      %s394 = sphi 0, %s380
      %s398 = sphi 0, %s398
      %s400 = sphi 0, %s398
      %s401 = sphi 0, %s400
      %s415 = sphi 0, %s401
      %s419 = sphi 0, %s419
      %s421 = sphi 0, %s419
      %s422 = sphi 0, %s421
      %s436 = sphi 0, %s422
      %s442 = sphi 0, %s444
      %s445 = sphi 0, %s442
      %s446 = sphi 0, %s445
      %s462 = sphi 0, %s446
    $region4: #{mlp_mixer_forward.1} parent=1 // loop_header_branch
      %31 = sbr.rel (%p29) target = $region8
    $region5: #{mlp_mixer_forward.1} parent=1 // loop_body
      %s33 = ssub.s32 %s28, 1
      %s34 = ssub.s32 %s28, 2
      %s35 = sadd.s32 %s28, 1
      %s36 = ssub.s32 %s28, %s35
      %p37 = scmp.eq.s32.totalorder %s36, 0
      %s39 = sadd.s32 %s38, 1
      %s40 = scalar_select %p37, %s38, %s39
      %p43 = pneg %p37
      %p44 = scmp.eq.s32.totalorder %s28, 1
      %p45 = por %p43, %p44
      %p46 = scmp.ne.s32.totalorder %s38, %s41
      %p47 = scmp.eq.s32.totalorder %s28, 0
      %p48 = por %p46, %p47
      %p49 = scmp.ne.s32.totalorder %s38, %s41
      %p50 = scmp.eq.s32.totalorder %s33, 1
      %p51 = por %p49, %p50
      %p52 = scmp.ne.s32.totalorder %s41, %s42
      %p53 = scmp.eq.s32.totalorder %s33, 0
      %p54 = por %p52, %p53
      %p55 = scmp.ne.s32.totalorder %s41, %s42
      %p56 = scmp.eq.s32.totalorder %s34, 1
      %p57 = por %p55, %p56
      %p59 = scmp.ne.s32.totalorder %s42, %s58
      %p60 = scmp.eq.s32.totalorder %s34, 0
      %p61 = por %p59, %p60
      %s63 = sadd.s32 %s62, 1
      %p66 = scmp.eq.s32.totalorder %s28, 1
      %p67 = scmp.ne.s32.totalorder %s62, %s64
      %p68 = scmp.eq.s32.totalorder %s28, 0
      %p69 = por %p67, %p68
      %p70 = scmp.ne.s32.totalorder %s62, %s64
      %p71 = scmp.eq.s32.totalorder %s33, 1
      %p72 = por %p70, %p71
      %p73 = scmp.ne.s32.totalorder %s64, %s65
      %p74 = scmp.eq.s32.totalorder %s33, 0
      %p75 = por %p73, %p74
      %p76 = scmp.ne.s32.totalorder %s64, %s65
      %p77 = scmp.eq.s32.totalorder %s34, 1
      %p78 = por %p76, %p77
      %p80 = scmp.ne.s32.totalorder %s65, %s79
      %p81 = scmp.eq.s32.totalorder %s34, 0
      %p82 = por %p80, %p81
      %s84 = sadd.s32 %s83, 1
      %p87 = scmp.eq.s32.totalorder %s28, 1
      %p88 = scmp.ne.s32.totalorder %s83, %s85
      %p89 = scmp.eq.s32.totalorder %s28, 0
      %p90 = por %p88, %p89
      %p91 = scmp.ne.s32.totalorder %s83, %s85
      %p92 = scmp.eq.s32.totalorder %s33, 1
      %p93 = por %p91, %p92
      %p94 = scmp.ne.s32.totalorder %s85, %s86
      %p95 = scmp.eq.s32.totalorder %s33, 0
      %p96 = por %p94, %p95
      %p97 = scmp.ne.s32.totalorder %s85, %s86
      %p98 = scmp.eq.s32.totalorder %s34, 1
      %p99 = por %p97, %p98
      %p101 = scmp.ne.s32.totalorder %s86, %s100
      %p102 = scmp.eq.s32.totalorder %s34, 0
      %p103 = por %p101, %p102
      %s105 = sadd.s32 %s104, 1
      %p108 = scmp.eq.s32.totalorder %s28, 1
      %p109 = scmp.ne.s32.totalorder %s104, %s106
      %p110 = scmp.eq.s32.totalorder %s28, 0
      %p111 = por %p109, %p110
      %p112 = scmp.ne.s32.totalorder %s104, %s106
      %p113 = scmp.eq.s32.totalorder %s33, 1
      %p114 = por %p112, %p113
      %p115 = scmp.ne.s32.totalorder %s106, %s107
      %p116 = scmp.eq.s32.totalorder %s33, 0
      %p117 = por %p115, %p116
      %p118 = scmp.ne.s32.totalorder %s106, %s107
      %p119 = scmp.eq.s32.totalorder %s34, 1
      %p120 = por %p118, %p119
      %p122 = scmp.ne.s32.totalorder %s107, %s121
      %p123 = scmp.eq.s32.totalorder %s34, 0
      %p124 = por %p122, %p123
      %s126 = sadd.s32 %s125, 1
      %p129 = scmp.eq.s32.totalorder %s28, 1
      %p130 = scmp.ne.s32.totalorder %s125, %s127
      %p131 = scmp.eq.s32.totalorder %s28, 0
      %p132 = por %p130, %p131
      %p133 = scmp.ne.s32.totalorder %s125, %s127
      %p134 = scmp.eq.s32.totalorder %s33, 1
      %p135 = por %p133, %p134
      %p136 = scmp.ne.s32.totalorder %s127, %s128
      %p137 = scmp.eq.s32.totalorder %s33, 0
      %p138 = por %p136, %p137
      %p139 = scmp.ne.s32.totalorder %s127, %s128
      %p140 = scmp.eq.s32.totalorder %s34, 1
      %p141 = por %p139, %p140
      %p143 = scmp.ne.s32.totalorder %s128, %s142
      %p144 = scmp.eq.s32.totalorder %s34, 0
      %p145 = por %p143, %p144
      %s147 = sadd.s32 %s146, 1
      %p150 = scmp.eq.s32.totalorder %s28, 1
      %p151 = scmp.ne.s32.totalorder %s146, %s148
      %p152 = scmp.eq.s32.totalorder %s28, 0
      %p153 = por %p151, %p152
      %p154 = scmp.ne.s32.totalorder %s146, %s148
      %p155 = scmp.eq.s32.totalorder %s33, 1
      %p156 = por %p154, %p155
      %p157 = scmp.ne.s32.totalorder %s148, %s149
      %p158 = scmp.eq.s32.totalorder %s33, 0
      %p159 = por %p157, %p158
      %p160 = scmp.ne.s32.totalorder %s148, %s149
      %p161 = scmp.eq.s32.totalorder %s34, 1
      %p162 = por %p160, %p161
      %p164 = scmp.ne.s32.totalorder %s149, %s163
      %p165 = scmp.eq.s32.totalorder %s34, 0
      %p166 = por %p164, %p165
      %s168 = sadd.s32 %s167, 1
      %p171 = scmp.eq.s32.totalorder %s28, 1
      %p172 = scmp.ne.s32.totalorder %s167, %s169
      %p173 = scmp.eq.s32.totalorder %s28, 0
      %p174 = por %p172, %p173
      %p175 = scmp.ne.s32.totalorder %s167, %s169
      %p176 = scmp.eq.s32.totalorder %s33, 1
      %p177 = por %p175, %p176
      %p178 = scmp.ne.s32.totalorder %s169, %s170
      %p179 = scmp.eq.s32.totalorder %s33, 0
      %p180 = por %p178, %p179
      %p181 = scmp.ne.s32.totalorder %s169, %s170
      %p182 = scmp.eq.s32.totalorder %s34, 1
      %p183 = por %p181, %p182
      %p185 = scmp.ne.s32.totalorder %s170, %s184
      %p186 = scmp.eq.s32.totalorder %s34, 0
      %p187 = por %p185, %p186
      %s189 = sadd.s32 %s188, 1
      %p192 = scmp.eq.s32.totalorder %s28, 1
      %p193 = scmp.ne.s32.totalorder %s188, %s190
      %p194 = scmp.eq.s32.totalorder %s28, 0
      %p195 = por %p193, %p194
      %p196 = scmp.ne.s32.totalorder %s188, %s190
      %p197 = scmp.eq.s32.totalorder %s33, 1
      %p198 = por %p196, %p197
      %p199 = scmp.ne.s32.totalorder %s190, %s191
      %p200 = scmp.eq.s32.totalorder %s33, 0
      %p201 = por %p199, %p200
      %p202 = scmp.ne.s32.totalorder %s190, %s191
      %p203 = scmp.eq.s32.totalorder %s34, 1
      %p204 = por %p202, %p203
      %p206 = scmp.ne.s32.totalorder %s191, %s205
      %p207 = scmp.eq.s32.totalorder %s34, 0
      %p208 = por %p206, %p207
      %s210 = sadd.s32 %s209, 1
      %p213 = scmp.eq.s32.totalorder %s28, 1
      %p214 = scmp.ne.s32.totalorder %s209, %s211
      %p215 = scmp.eq.s32.totalorder %s28, 0
      %p216 = por %p214, %p215
      %p217 = scmp.ne.s32.totalorder %s209, %s211
      %p218 = scmp.eq.s32.totalorder %s33, 1
      %p219 = por %p217, %p218
      %p220 = scmp.ne.s32.totalorder %s211, %s212
      %p221 = scmp.eq.s32.totalorder %s33, 0
      %p222 = por %p220, %p221
      %p223 = scmp.ne.s32.totalorder %s211, %s212
      %p224 = scmp.eq.s32.totalorder %s34, 1
      %p225 = por %p223, %p224
      %p227 = scmp.ne.s32.totalorder %s212, %s226
      %p228 = scmp.eq.s32.totalorder %s34, 0
      %p229 = por %p227, %p228
      %s231 = sadd.s32 %s230, 1
      %p234 = scmp.eq.s32.totalorder %s28, 1
      %p235 = scmp.ne.s32.totalorder %s230, %s232
      %p236 = scmp.eq.s32.totalorder %s28, 0
      %p237 = por %p235, %p236
      %p238 = scmp.ne.s32.totalorder %s230, %s232
      %p239 = scmp.eq.s32.totalorder %s33, 1
      %p240 = por %p238, %p239
      %p241 = scmp.ne.s32.totalorder %s232, %s233
      %p242 = scmp.eq.s32.totalorder %s33, 0
      %p243 = por %p241, %p242
      %p244 = scmp.ne.s32.totalorder %s232, %s233
      %p245 = scmp.eq.s32.totalorder %s34, 1
      %p246 = por %p244, %p245
      %p248 = scmp.ne.s32.totalorder %s233, %s247
      %p249 = scmp.eq.s32.totalorder %s34, 0
      %p250 = por %p248, %p249
      %s252 = sadd.s32 %s251, 1
      %p255 = scmp.eq.s32.totalorder %s28, 1
      %p256 = scmp.ne.s32.totalorder %s251, %s253
      %p257 = scmp.eq.s32.totalorder %s28, 0
      %p258 = por %p256, %p257
      %p259 = scmp.ne.s32.totalorder %s251, %s253
      %p260 = scmp.eq.s32.totalorder %s33, 1
      %p261 = por %p259, %p260
      %p262 = scmp.ne.s32.totalorder %s253, %s254
      %p263 = scmp.eq.s32.totalorder %s33, 0
      %p264 = por %p262, %p263
      %p265 = scmp.ne.s32.totalorder %s253, %s254
      %p266 = scmp.eq.s32.totalorder %s34, 1
      %p267 = por %p265, %p266
      %p269 = scmp.ne.s32.totalorder %s254, %s268
      %p270 = scmp.eq.s32.totalorder %s34, 0
      %p271 = por %p269, %p270
      %s273 = sadd.s32 %s272, 1
      %p276 = scmp.eq.s32.totalorder %s28, 1
      %p277 = scmp.ne.s32.totalorder %s272, %s274
      %p278 = scmp.eq.s32.totalorder %s28, 0
      %p279 = por %p277, %p278
      %p280 = scmp.ne.s32.totalorder %s272, %s274
      %p281 = scmp.eq.s32.totalorder %s33, 1
      %p282 = por %p280, %p281
      %p283 = scmp.ne.s32.totalorder %s274, %s275
      %p284 = scmp.eq.s32.totalorder %s33, 0
      %p285 = por %p283, %p284
      %p286 = scmp.ne.s32.totalorder %s274, %s275
      %p287 = scmp.eq.s32.totalorder %s34, 1
      %p288 = por %p286, %p287
      %p290 = scmp.ne.s32.totalorder %s275, %s289
      %p291 = scmp.eq.s32.totalorder %s34, 0
      %p292 = por %p290, %p291
      %s294 = sadd.s32 %s293, 1
      %p297 = scmp.eq.s32.totalorder %s28, 1
      %p298 = scmp.ne.s32.totalorder %s293, %s295
      %p299 = scmp.eq.s32.totalorder %s28, 0
      %p300 = por %p298, %p299
      %p301 = scmp.ne.s32.totalorder %s293, %s295
      %p302 = scmp.eq.s32.totalorder %s33, 1
      %p303 = por %p301, %p302
      %p304 = scmp.ne.s32.totalorder %s295, %s296
      %p305 = scmp.eq.s32.totalorder %s33, 0
      %p306 = por %p304, %p305
      %p307 = scmp.ne.s32.totalorder %s295, %s296
      %p308 = scmp.eq.s32.totalorder %s34, 1
      %p309 = por %p307, %p308
      %p311 = scmp.ne.s32.totalorder %s296, %s310
      %p312 = scmp.eq.s32.totalorder %s34, 0
      %p313 = por %p311, %p312
      %s315 = sadd.s32 %s314, 1
      %p318 = scmp.eq.s32.totalorder %s28, 1
      %p319 = scmp.ne.s32.totalorder %s314, %s316
      %p320 = scmp.eq.s32.totalorder %s28, 0
      %p321 = por %p319, %p320
      %p322 = scmp.ne.s32.totalorder %s314, %s316
      %p323 = scmp.eq.s32.totalorder %s33, 1
      %p324 = por %p322, %p323
      %p325 = scmp.ne.s32.totalorder %s316, %s317
      %p326 = scmp.eq.s32.totalorder %s33, 0
      %p327 = por %p325, %p326
      %p328 = scmp.ne.s32.totalorder %s316, %s317
      %p329 = scmp.eq.s32.totalorder %s34, 1
      %p330 = por %p328, %p329
      %p332 = scmp.ne.s32.totalorder %s317, %s331
      %p333 = scmp.eq.s32.totalorder %s34, 0
      %p334 = por %p332, %p333
      %s336 = sadd.s32 %s335, 1
      %p339 = scmp.eq.s32.totalorder %s28, 1
      %p340 = scmp.ne.s32.totalorder %s335, %s337
      %p341 = scmp.eq.s32.totalorder %s28, 0
      %p342 = por %p340, %p341
      %p343 = scmp.ne.s32.totalorder %s335, %s337
      %p344 = scmp.eq.s32.totalorder %s33, 1
      %p345 = por %p343, %p344
      %p346 = scmp.ne.s32.totalorder %s337, %s338
      %p347 = scmp.eq.s32.totalorder %s33, 0
      %p348 = por %p346, %p347
      %p349 = scmp.ne.s32.totalorder %s337, %s338
      %p350 = scmp.eq.s32.totalorder %s34, 1
      %p351 = por %p349, %p350
      %p353 = scmp.ne.s32.totalorder %s338, %s352
      %p354 = scmp.eq.s32.totalorder %s34, 0
      %p355 = por %p353, %p354
      %s357 = sadd.s32 %s356, 1
      %p360 = scmp.eq.s32.totalorder %s28, 1
      %p361 = scmp.ne.s32.totalorder %s356, %s358
      %p362 = scmp.eq.s32.totalorder %s28, 0
      %p363 = por %p361, %p362
      %p364 = scmp.ne.s32.totalorder %s356, %s358
      %p365 = scmp.eq.s32.totalorder %s33, 1
      %p366 = por %p364, %p365
      %p367 = scmp.ne.s32.totalorder %s358, %s359
      %p368 = scmp.eq.s32.totalorder %s33, 0
      %p369 = por %p367, %p368
      %p370 = scmp.ne.s32.totalorder %s358, %s359
      %p371 = scmp.eq.s32.totalorder %s34, 1
      %p372 = por %p370, %p371
      %p374 = scmp.ne.s32.totalorder %s359, %s373
      %p375 = scmp.eq.s32.totalorder %s34, 0
      %p376 = por %p374, %p375
      %s378 = sadd.s32 %s377, 1
      %p381 = scmp.eq.s32.totalorder %s28, 1
      %p382 = scmp.ne.s32.totalorder %s377, %s379
      %p383 = scmp.eq.s32.totalorder %s28, 0
      %p384 = por %p382, %p383
      %p385 = scmp.ne.s32.totalorder %s377, %s379
      %p386 = scmp.eq.s32.totalorder %s33, 1
      %p387 = por %p385, %p386
      %p388 = scmp.ne.s32.totalorder %s379, %s380
      %p389 = scmp.eq.s32.totalorder %s33, 0
      %p390 = por %p388, %p389
      %p391 = scmp.ne.s32.totalorder %s379, %s380
      %p392 = scmp.eq.s32.totalorder %s34, 1
      %p393 = por %p391, %p392
      %p395 = scmp.ne.s32.totalorder %s380, %s394
      %p396 = scmp.eq.s32.totalorder %s34, 0
      %p397 = por %p395, %p396
      %s399 = sadd.s32 %s398, 1
      %p402 = scmp.eq.s32.totalorder %s28, 1
      %p403 = scmp.ne.s32.totalorder %s398, %s400
      %p404 = scmp.eq.s32.totalorder %s28, 0
      %p405 = por %p403, %p404
      %p406 = scmp.ne.s32.totalorder %s398, %s400
      %p407 = scmp.eq.s32.totalorder %s33, 1
      %p408 = por %p406, %p407
      %p409 = scmp.ne.s32.totalorder %s400, %s401
      %p410 = scmp.eq.s32.totalorder %s33, 0
      %p411 = por %p409, %p410
      %p412 = scmp.ne.s32.totalorder %s400, %s401
      %p413 = scmp.eq.s32.totalorder %s34, 1
      %p414 = por %p412, %p413
      %p416 = scmp.ne.s32.totalorder %s401, %s415
      %p417 = scmp.eq.s32.totalorder %s34, 0
      %p418 = por %p416, %p417
      %s420 = sadd.s32 %s419, 1
      %p423 = scmp.eq.s32.totalorder %s28, 1
      %p424 = scmp.ne.s32.totalorder %s419, %s421
      %p425 = scmp.eq.s32.totalorder %s28, 0
      %p426 = por %p424, %p425
      %p427 = scmp.ne.s32.totalorder %s419, %s421
      %p428 = scmp.eq.s32.totalorder %s33, 1
      %p429 = por %p427, %p428
      %p430 = scmp.ne.s32.totalorder %s421, %s422
      %p431 = scmp.eq.s32.totalorder %s33, 0
      %p432 = por %p430, %p431
      %p433 = scmp.ne.s32.totalorder %s421, %s422
      %p434 = scmp.eq.s32.totalorder %s34, 1
      %p435 = por %p433, %p434
      %p437 = scmp.ne.s32.totalorder %s422, %s436
      %p438 = scmp.eq.s32.totalorder %s34, 0
      %p439 = por %p437, %p438
      %s440 = ssub.s32 %s28, %s35
      %p441 = scmp.eq.s32.totalorder %s440, 0
      %s443 = sadd.s32 %s442, 1
      %s444 = scalar_select %p441, %s442, %s443
      %p447 = pneg %p441
      %p448 = scmp.eq.s32.totalorder %s28, 1
      %p449 = por %p447, %p448
      %p450 = scmp.ne.s32.totalorder %s442, %s445
      %p451 = scmp.eq.s32.totalorder %s28, 0
      %p452 = por %p450, %p451
      %p453 = scmp.ne.s32.totalorder %s442, %s445
      %p454 = scmp.eq.s32.totalorder %s33, 1
      %p455 = por %p453, %p454
      %p456 = scmp.ne.s32.totalorder %s445, %s446
      %p457 = scmp.eq.s32.totalorder %s33, 0
      %p458 = por %p456, %p457
      %p459 = scmp.ne.s32.totalorder %s445, %s446
      %p460 = scmp.eq.s32.totalorder %s34, 1
      %p461 = por %p459, %p460
      %p463 = scmp.ne.s32.totalorder %s446, %s462
      %p464 = scmp.eq.s32.totalorder %s34, 0
      %p465 = por %p463, %p464
      %p466 = scmp.le.s32.totalorder 1, %s28
      %p467 = scmp.lt.s32.totalorder %s28, 3
      %p468 = pnand %p466, %p467
      %p469 = pneg %p468
      // Predicated region
      $region9: #{mlp_mixer_forward.1} parent=5 // pred_check
        _
      $region10: #{mlp_mixer_forward.1} parent=5 // pred_check_branch
        %471 = sbr.rel (%p468) target = $region12
      $region11: #{mlp_mixer_forward.1} parent=5 // pred_region
        %s472 = ssub.s32 %s28, 1
        // Predicated region
        $region13: #{mlp_mixer_forward.1} parent=11 // pred_check
          %p473 = pneg %p75
        $region14: #{mlp_mixer_forward.1} parent=11 // pred_check_branch
          %475 = sbr.rel (%p473) target = $region16
        $region15: #{mlp_mixer_forward.1} parent=11 // pred_region
          _
        $region16: #{mlp_mixer_forward.1} parent=11 // pred_fallthru
          _
        // Predicated region
        $region17: #{mlp_mixer_forward.1} parent=11 // pred_check
          %p476 = pneg %p96
        $region18: #{mlp_mixer_forward.1} parent=11 // pred_check_branch
          %478 = sbr.rel (%p476) target = $region20
        $region19: #{mlp_mixer_forward.1} parent=11 // pred_region
          _
        $region20: #{mlp_mixer_forward.1} parent=11 // pred_fallthru
          _
        // Predicated region
        $region21: #{mlp_mixer_forward.1} parent=11 // pred_check
          %p479 = pneg %p117
        $region22: #{mlp_mixer_forward.1} parent=11 // pred_check_branch
          %481 = sbr.rel (%p479) target = $region24
        $region23: #{mlp_mixer_forward.1} parent=11 // pred_region
          _
        $region24: #{mlp_mixer_forward.1} parent=11 // pred_fallthru
          _
        // Predicated region
        $region25: #{mlp_mixer_forward.1} parent=11 // pred_check
          %p482 = pneg %p138
        $region26: #{mlp_mixer_forward.1} parent=11 // pred_check_branch
          %484 = sbr.rel (%p482) target = $region28
        $region27: #{mlp_mixer_forward.1} parent=11 // pred_region
          _
        $region28: #{mlp_mixer_forward.1} parent=11 // pred_fallthru
          _
        // Predicated region
        $region29: #{mlp_mixer_forward.1} parent=11 // pred_check
          %p485 = pneg %p159
        $region30: #{mlp_mixer_forward.1} parent=11 // pred_check_branch
          %487 = sbr.rel (%p485) target = $region32
        $region31: #{mlp_mixer_forward.1} parent=11 // pred_region
          _
        $region32: #{mlp_mixer_forward.1} parent=11 // pred_fallthru
          _
        // Predicated region
        $region33: #{mlp_mixer_forward.1} parent=11 // pred_check
          %p488 = pneg %p180
        $region34: #{mlp_mixer_forward.1} parent=11 // pred_check_branch
          %490 = sbr.rel (%p488) target = $region36
        $region35: #{mlp_mixer_forward.1} parent=11 // pred_region
          _
        $region36: #{mlp_mixer_forward.1} parent=11 // pred_fallthru
          _
        // Predicated region
        $region37: #{mlp_mixer_forward.1} parent=11 // pred_check
          %p491 = pneg %p201
        $region38: #{mlp_mixer_forward.1} parent=11 // pred_check_branch
          %493 = sbr.rel (%p491) target = $region40
        $region39: #{mlp_mixer_forward.1} parent=11 // pred_region
          _
        $region40: #{mlp_mixer_forward.1} parent=11 // pred_fallthru
          _
        // Predicated region
        $region41: #{mlp_mixer_forward.1} parent=11 // pred_check
          %p494 = pneg %p222
        $region42: #{mlp_mixer_forward.1} parent=11 // pred_check_branch
          %496 = sbr.rel (%p494) target = $region44
        $region43: #{mlp_mixer_forward.1} parent=11 // pred_region
          _
        $region44: #{mlp_mixer_forward.1} parent=11 // pred_fallthru
          _
        // Predicated region
        $region45: #{mlp_mixer_forward.1} parent=11 // pred_check
          %p497 = pneg %p243
        $region46: #{mlp_mixer_forward.1} parent=11 // pred_check_branch
          %499 = sbr.rel (%p497) target = $region48
        $region47: #{mlp_mixer_forward.1} parent=11 // pred_region
          _
        $region48: #{mlp_mixer_forward.1} parent=11 // pred_fallthru
          _
        // Predicated region
        $region49: #{mlp_mixer_forward.1} parent=11 // pred_check
          %p500 = pneg %p264
        $region50: #{mlp_mixer_forward.1} parent=11 // pred_check_branch
          %502 = sbr.rel (%p500) target = $region52
        $region51: #{mlp_mixer_forward.1} parent=11 // pred_region
          _
        $region52: #{mlp_mixer_forward.1} parent=11 // pred_fallthru
          _
        // Predicated region
        $region53: #{mlp_mixer_forward.1} parent=11 // pred_check
          %p503 = pneg %p285
        $region54: #{mlp_mixer_forward.1} parent=11 // pred_check_branch
          %505 = sbr.rel (%p503) target = $region56
        $region55: #{mlp_mixer_forward.1} parent=11 // pred_region
          _
        $region56: #{mlp_mixer_forward.1} parent=11 // pred_fallthru
          _
        // Predicated region
        $region57: #{mlp_mixer_forward.1} parent=11 // pred_check
          %p506 = pneg %p306
        $region58: #{mlp_mixer_forward.1} parent=11 // pred_check_branch
          %508 = sbr.rel (%p506) target = $region60
        $region59: #{mlp_mixer_forward.1} parent=11 // pred_region
          _
        $region60: #{mlp_mixer_forward.1} parent=11 // pred_fallthru
          _
        // Predicated region
        $region61: #{mlp_mixer_forward.1} parent=11 // pred_check
          %p509 = pneg %p327
        $region62: #{mlp_mixer_forward.1} parent=11 // pred_check_branch
          %511 = sbr.rel (%p509) target = $region64
        $region63: #{mlp_mixer_forward.1} parent=11 // pred_region
          _
        $region64: #{mlp_mixer_forward.1} parent=11 // pred_fallthru
          _
        // Predicated region
        $region65: #{mlp_mixer_forward.1} parent=11 // pred_check
          %p512 = pneg %p348
        $region66: #{mlp_mixer_forward.1} parent=11 // pred_check_branch
          %514 = sbr.rel (%p512) target = $region68
        $region67: #{mlp_mixer_forward.1} parent=11 // pred_region
          _
        $region68: #{mlp_mixer_forward.1} parent=11 // pred_fallthru
          _
        // Predicated region
        $region69: #{mlp_mixer_forward.1} parent=11 // pred_check
          %p515 = pneg %p369
        $region70: #{mlp_mixer_forward.1} parent=11 // pred_check_branch
          %517 = sbr.rel (%p515) target = $region72
        $region71: #{mlp_mixer_forward.1} parent=11 // pred_region
          _
        $region72: #{mlp_mixer_forward.1} parent=11 // pred_fallthru
          _
        // Predicated region
        $region73: #{mlp_mixer_forward.1} parent=11 // pred_check
          %p518 = pneg %p390
        $region74: #{mlp_mixer_forward.1} parent=11 // pred_check_branch
          %520 = sbr.rel (%p518) target = $region76
        $region75: #{mlp_mixer_forward.1} parent=11 // pred_region
          _
        $region76: #{mlp_mixer_forward.1} parent=11 // pred_fallthru
          _
        // Predicated region
        $region77: #{mlp_mixer_forward.1} parent=11 // pred_check
          %p521 = pneg %p411
        $region78: #{mlp_mixer_forward.1} parent=11 // pred_check_branch
          %523 = sbr.rel (%p521) target = $region80
        $region79: #{mlp_mixer_forward.1} parent=11 // pred_region
          _
        $region80: #{mlp_mixer_forward.1} parent=11 // pred_fallthru
          _
        // Predicated region
        $region81: #{mlp_mixer_forward.1} parent=11 // pred_check
          %p524 = pneg %p432
        $region82: #{mlp_mixer_forward.1} parent=11 // pred_check_branch
          %526 = sbr.rel (%p524) target = $region84
        $region83: #{mlp_mixer_forward.1} parent=11 // pred_region
          _
        $region84: #{mlp_mixer_forward.1} parent=11 // pred_fallthru
          _
      $region12: #{mlp_mixer_forward.1} parent=5 // pred_fallthru
        _
      %p527 = scmp.lt.s32.totalorder %s28, 2
      // Predicated region
      $region85: #{mlp_mixer_forward.1} parent=5 // pred_check
        %p528 = pneg %p527
      $region86: #{mlp_mixer_forward.1} parent=5 // pred_check_branch
        %530 = sbr.rel (%p528) target = $region88
      $region87: #{mlp_mixer_forward.1} parent=5 // pred_region
        // Predicated region
        $region89: #{mlp_mixer_forward.1} parent=87 // pred_check
          %p531 = pneg %p48
        $region90: #{mlp_mixer_forward.1} parent=87 // pred_check_branch
          %533 = sbr.rel (%p531) target = $region92
        $region91: #{mlp_mixer_forward.1} parent=87 // pred_region
          %p534 = scmp.lt.s32.totalorder %s28, 1
          %s535 = scalar_select %p534, %s28, 1
          %s536 = smul.addr %s535, 2
          %s537 = smul.addr %s536, 4
          %s538 = scalar_lea.vmem %s0, %s537
        $region92: #{mlp_mixer_forward.1} parent=87 // pred_fallthru
          _
      $region88: #{mlp_mixer_forward.1} parent=5 // pred_fallthru
        _
      %p539 = scmp.le.s32.totalorder 1, %s28
      %p540 = scmp.lt.s32.totalorder %s28, 3
      %p541 = pnand %p539, %p540
      %p542 = pneg %p541
      // Predicated region
      $region93: #{mlp_mixer_forward.1} parent=5 // pred_check
        _
      $region94: #{mlp_mixer_forward.1} parent=5 // pred_check_branch
        %544 = sbr.rel (%p541) target = $region96
      $region95: #{mlp_mixer_forward.1} parent=5 // pred_region
        %s545 = ssub.s32 %s28, 1
        %p546 = scmp.lt.s32.totalorder %s33, 1
        %s547 = scalar_select %p546, %s33, 1
        %s548 = smul.addr %s547, 2
        %s549 = smul.addr %s548, 4
        %s550 = scalar_lea.vmem %s0, %s549
        %p551 = pneg %p54
        %p552 = pneg %p51
        %p553 = pneg %p75
        %p554 = pneg %p72
        %p555 = pneg %p96
        %p556 = pneg %p93
        %p557 = pneg %p117
        %p558 = pneg %p114
        %p559 = pneg %p138
        %p560 = pneg %p135
        %p561 = pneg %p159
        %p562 = pneg %p156
        %p563 = pneg %p180
        %p564 = pneg %p177
        %p565 = pneg %p201
        %p566 = pneg %p198
        %p567 = pneg %p222
        %p568 = pneg %p219
        %p569 = pneg %p243
        %p570 = pneg %p240
        %p571 = pneg %p264
        %p572 = pneg %p261
        %p573 = pneg %p285
        %p574 = pneg %p282
        %p575 = pneg %p306
        %p576 = pneg %p303
        %p577 = pneg %p327
        %p578 = pneg %p324
        %p579 = pneg %p348
        %p580 = pneg %p345
        %p581 = pneg %p369
        %p582 = pneg %p366
        %p583 = pneg %p390
        %p584 = pneg %p387
        %p585 = pneg %p411
        %p586 = pneg %p408
        %p587 = pneg %p432
        %p588 = pneg %p429
        %p589 = pneg %p458
        %p590 = pneg %p455
        %s591 = sand.u32 %s445, 1
        %s592 = scalar_lea.sflag [#allocation3], %s591
        %s593 = sand.u32 %s445, 1
        %s594 = scalar_lea.vmem [#allocation2], %s593
        %p595 = scmp.lt.s32.totalorder %s33, 1
        %s596 = scalar_select %p595, %s33, 1
        %s597 = smul.addr %s596, 2
        %s598 = smul.addr %s597, 4
        %s599 = scalar_lea.vmem %s0, %s598
        %v601 = vld [vmem:[%s599] sm:$0xf]
        %v602 = vld [vmem:[%s599 + $0x4] sm:$0xf]
        %v603 = vld [vmem:[%s1] sm:$0xf]
        %v604 = vld [vmem:[%s1 + $0x4] sm:$0xf]
        %v605 = vld [vmem:[%s1 + $0x8] sm:$0xf]
        %v606 = vld [vmem:[%s1 + $0xc] sm:$0xf]
        %v607 = vld [vmem:[%s1 + $0x10] sm:$0xf]
        %v608 = vld [vmem:[%s1 + $0x14] sm:$0xf]
        %v609 = vld [vmem:[%s2] sm:$0x1]
        %v611 = vperm.slane %v609, 0
        %v615 = vunpack.c.l.b16 %v601
        %v616 = vunpack.c.l.b16 %v602
        %v617 = vpack.c.b16 %v616, %v615
        %v624 = vunpack.c.l.b16 %v603
        %v625 = vunpack.c.l.b16 %v604
        %v626 = vunpack.c.l.b16 %v605
        %v627 = vunpack.c.l.b16 %v606
        %v628 = vunpack.c.l.b16 %v607
        %v629 = vunpack.c.l.b16 %v608
        %v630 = vpack.c.b16 %v625, %v624
        %v631 = vpack.c.b16 %v627, %v626
        %v632 = vpack.c.b16 %v629, %v628
        %vm636 = vcmask 392192
        %v638 = vsel %vm636, %v617, 0
        %640 = vmatpush.bf16.msra.mxu0 0
        %641 = vmatpush.bf16.msra.mxu0 0
        %642 = vmatpush.bf16.msra.mxu0 0
        %643 = vmatpush.bf16.msra.mxu0 0
        %644 = vmatpush.bf16.msra.mxu0 0
        %645 = vmatpush.bf16.msra.mxu0 %v632
        %646 = vmatpush.bf16.msra.mxu0 %v631
        %647 = vmatpush.bf16.msra.mxu0 %v630
        %648 = vmatmul.bf16.gmra.mxu0 %v638
        %v649 = vpop.f32.mrf.mxu0
        %v650 = vadd.f32 %v611, %v649
        %v651 = vpop.f32.mrf.mxu0
        %v652 = vadd.f32 %v611, %v651
        %653 = vdwg.mxu0
        loop: start=0, step=1, limit=2
        $region97: #{mlp_mixer_forward.1} parent=95 // loop_pre_header
          _
        $region98: #{mlp_mixer_forward.1} parent=95 // loop_header
          %s655 = sphi 0, %s659
          %p656 = scmp.ge.s32.totalorder %s655, 2
          %v660 = vphi %v650, %v1310
          %v661 = vphi %v652, %v1311
        $region99: #{mlp_mixer_forward.1} parent=95 // loop_header_branch
          %658 = sbr.rel (%p656) target = $region103
        $region100: #{mlp_mixer_forward.1} parent=95 // loop_body
          %662 = vxpose.xlu0.b32.start [1/16] %v660, 128
          %663 = vxpose.xlu0.b32.cont [2/16] %v661, 128
          %664 = vxpose.xlu0.b32.cont [3/16] 0.0, 128
          %665 = vxpose.xlu0.b32.cont [4/16] 0.0, 128
          %666 = vxpose.xlu0.b32.cont [5/16] 0.0, 128
          %667 = vxpose.xlu0.b32.cont [6/16] 0.0, 128
          %668 = vxpose.xlu0.b32.cont [7/16] 0.0, 128
          %669 = vxpose.xlu0.b32.cont [8/16] 0.0, 128
          %670 = vxpose.xlu0.b32.cont [9/16] 0.0, 128
          %671 = vxpose.xlu0.b32.cont [10/16] 0.0, 128
          %672 = vxpose.xlu0.b32.cont [11/16] 0.0, 128
          %673 = vxpose.xlu0.b32.cont [12/16] 0.0, 128
          %674 = vxpose.xlu0.b32.cont [13/16] 0.0, 128
          %675 = vxpose.xlu0.b32.cont [14/16] 0.0, 128
          %676 = vxpose.xlu0.b32.cont [15/16] 0.0, 128
          %677 = vxpose.xlu0.b32.end [16/16] 0.0, 128
          %v678 = vpop.trf.xlu0
          %v679 = vpop.trf.xlu0
          %v680 = vpop.trf.xlu0
          %v681 = vpop.trf.xlu0
          %v682 = vpop.trf.xlu0
          %v683 = vpop.trf.xlu0
          %v684 = vpop.trf.xlu0
          %v685 = vpop.trf.xlu0
          %v686 = vpop.trf.xlu0
          %v687 = vpop.trf.xlu0
          %v688 = vpop.trf.xlu0
          %v689 = vpop.trf.xlu0
          %v690 = vpop.trf.xlu0
          %v691 = vpop.trf.xlu0
          %v692 = vpop.trf.xlu0
          %v693 = vpop.trf.xlu0
          %s694 = scalar_lea.vmem %s3, %s655
          %v695 = vld [vmem:[%s694] sm:$0x1]
          %s696 = scalar_lea.vmem %s4, %s655
          %v697 = vld [vmem:[%s696] sm:$0x1]
          %vm698 = vcmask 130048
          %v699 = vsel %vm698, %v678, 0.0
          %700 = vadd.xlane.f32.xlu0 %v699
          %v701 = vpop.xlane.xlu0 %700
          %v702 = vsel %vm698, %v679, 0.0
          %703 = vadd.xlane.f32.xlu0 %v702
          %v704 = vpop.xlane.xlu0 %703
          %v705 = vsel %vm698, %v680, 0.0
          %706 = vadd.xlane.f32.xlu0 %v705
          %v707 = vpop.xlane.xlu0 %706
          %v708 = vsel %vm698, %v681, 0.0
          %709 = vadd.xlane.f32.xlu0 %v708
          %v710 = vpop.xlane.xlu0 %709
          %v711 = vrcp.pop 16.0
          %v712 = vmul.f32 16.0, %v711
          %v713 = vsub.f32 1.0, %v712
          %v714 = vmul.f32 %v711, %v713
          %v715 = vadd.f32 %v711, %v714
          %vm716 = vweird.f32 %v711
          %v717 = vsel %vm716, %v711, %v715
          %v718 = vmul.f32 %v701, %v717
          %v719 = vmul.f32 %v704, %v717
          %v720 = vmul.f32 %v707, %v717
          %v721 = vmul.f32 %v710, %v717
          %v722 = vsub.f32 %v678, %v718
          %v723 = vsub.f32 %v679, %v719
          %v724 = vsub.f32 %v680, %v720
          %v725 = vsub.f32 %v681, %v721
          %v726 = vmul.f32 %v722, %v722
          %v727 = vmul.f32 %v723, %v723
          %v728 = vmul.f32 %v724, %v724
          %v729 = vmul.f32 %v725, %v725
          %v730 = vsel %vm698, %v726, 0.0
          %731 = vadd.xlane.f32.xlu0 %v730
          %v732 = vpop.xlane.xlu0 %731
          %v733 = vsel %vm698, %v727, 0.0
          %734 = vadd.xlane.f32.xlu0 %v733
          %v735 = vpop.xlane.xlu0 %734
          %v736 = vsel %vm698, %v728, 0.0
          %737 = vadd.xlane.f32.xlu0 %v736
          %v738 = vpop.xlane.xlu0 %737
          %v739 = vsel %vm698, %v729, 0.0
          %740 = vadd.xlane.f32.xlu0 %v739
          %v741 = vpop.xlane.xlu0 %740
          %v742 = vmul.f32 %v732, %v717
          %v743 = vmul.f32 %v735, %v717
          %v744 = vmul.f32 %v738, %v717
          %v745 = vmul.f32 %v741, %v717
          %v746 = vadd.f32 %v742, 1e-05
          %v747 = vadd.f32 %v743, 1e-05
          %v748 = vadd.f32 %v744, 1e-05
          %v749 = vadd.f32 %v745, 1e-05
          %v750 = vrsqrt.pop %v746
          %v751 = vmul.f32 %v750, %v746
          %v752 = vmul.f32 %v751, %v750
          %v753 = vmul.f32 0.5, %v752
          %v754 = vsub.f32 1.5, %v753
          %v755 = vmul.f32 %v750, %v754
          %vm756 = vweird.f32 %v746
          %vm757 = vweird.f32 %v750
          %vm758 = vmor %vm756, %vm757
          %v759 = vsel %vm758, %v750, %v755
          %v760 = vrsqrt.pop %v747
          %v761 = vmul.f32 %v760, %v747
          %v762 = vmul.f32 %v761, %v760
          %v763 = vmul.f32 0.5, %v762
          %v764 = vsub.f32 1.5, %v763
          %v765 = vmul.f32 %v760, %v764
          %vm766 = vweird.f32 %v747
          %vm767 = vweird.f32 %v760
          %vm768 = vmor %vm766, %vm767
          %v769 = vsel %vm768, %v760, %v765
          %v770 = vrsqrt.pop %v748
          %v771 = vmul.f32 %v770, %v748
          %v772 = vmul.f32 %v771, %v770
          %v773 = vmul.f32 0.5, %v772
          %v774 = vsub.f32 1.5, %v773
          %v775 = vmul.f32 %v770, %v774
          %vm776 = vweird.f32 %v748
          %vm777 = vweird.f32 %v770
          %vm778 = vmor %vm776, %vm777
          %v779 = vsel %vm778, %v770, %v775
          %v780 = vrsqrt.pop %v749
          %v781 = vmul.f32 %v780, %v749
          %v782 = vmul.f32 %v781, %v780
          %v783 = vmul.f32 0.5, %v782
          %v784 = vsub.f32 1.5, %v783
          %v785 = vmul.f32 %v780, %v784
          %vm786 = vweird.f32 %v749
          %vm787 = vweird.f32 %v780
          %vm788 = vmor %vm786, %vm787
          %v789 = vsel %vm788, %v780, %v785
          %v790 = vmul.f32 %v722, %v759
          %v791 = vmul.f32 %v723, %v769
          %v792 = vmul.f32 %v724, %v779
          %v793 = vmul.f32 %v725, %v789
          %v795 = vperm.slane %v695, 0
          %v797 = vmul.f32 %v790, %v795
          %v798 = vmul.f32 %v791, %v795
          %v799 = vmul.f32 %v792, %v795
          %v800 = vmul.f32 %v793, %v795
          %v802 = vperm.slane %v697, 0
          %v804 = vadd.f32 %v797, %v802
          %v805 = vadd.f32 %v798, %v802
          %v806 = vadd.f32 %v799, %v802
          %v807 = vadd.f32 %v800, %v802
          %v808 = vpack.c.bf16 %v805, %v804
          %v809 = vpack.c.bf16 %v807, %v806
          %s810 = smul.u32 %s655, 2
          %s811 = smul.addr %s810, 4
          %s812 = scalar_lea.vmem %s5, %s811
          %v813 = vld [vmem:[%s812] sm:$0xf]
          %v814 = vld [vmem:[%s812 + $0x4] sm:$0xf]
          %s815 = scalar_lea.vmem %s6, %s655
          %v816 = vld [vmem:[%s815] sm:$0x1]
          %v818 = vperm.slane %v816, 0
          %v822 = vunpack.c.l.b16 %v813
          %v823 = vunpack.c.l.b16 %v814
          %v824 = vpack.c.b16 %v823, %v822
          %v827 = vsel %vm698, %v808, 0
          %v830 = vsel %vm698, %v809, 0
          %832 = vmatpush.bf16.msra.mxu0 0
          %833 = vmatpush.bf16.msra.mxu0 0
          %834 = vmatpush.bf16.msra.mxu0 0
          %835 = vmatpush.bf16.msra.mxu0 0
          %836 = vmatpush.bf16.msra.mxu0 0
          %837 = vmatpush.bf16.msra.mxu0 0
          %838 = vmatpush.bf16.msra.mxu0 0
          %839 = vmatpush.bf16.msra.mxu0 %v824
          %840 = vmatmul.bf16.gmra.mxu0 %v827
          %v841 = vpop.f32.mrf.mxu0
          %v842 = vadd.f32 %v818, %v841
          %v843 = vpop.f32.mrf.mxu0
          %v844 = vadd.f32 %v818, %v843
          %845 = vmatmul.bf16.gmra.mxu0 %v830
          %v846 = vpop.f32.mrf.mxu0
          %v847 = vadd.f32 %v818, %v846
          %v848 = vpop.f32.mrf.mxu0
          %v849 = vadd.f32 %v818, %v848
          %850 = vdwg.mxu0
          %v851 = vmul.f32 %v842, 0.5
          %v852 = vmul.f32 %v844, 0.5
          %v853 = vmul.f32 %v847, 0.5
          %v854 = vmul.f32 %v849, 0.5
          %v855 = vmul.f32 %v842, 0.70710677
          %v856 = vmul.f32 %v844, 0.70710677
          %v857 = vmul.f32 %v847, 0.70710677
          %v858 = vmul.f32 %v849, 0.70710677
          %vm859 = vcmp.ge.f32.partialorder %v855, 0.0
          %vm860 = vcmp.ge.f32.partialorder %v856, 0.0
          %vm861 = vcmp.ge.f32.partialorder %v857, 0.0
          %vm862 = vcmp.ge.f32.partialorder %v858, 0.0
          %v863 = vsel %vm859, 1.0, -1.0
          %v864 = vsel %vm860, 1.0, -1.0
          %v865 = vsel %vm861, 1.0, -1.0
          %v866 = vsel %vm862, 1.0, -1.0
          %v867 = vand.u32 2147483647, %v855
          %v868 = vand.u32 2147483647, %v856
          %v869 = vand.u32 2147483647, %v857
          %v870 = vand.u32 2147483647, %v858
          %v871 = vmul.f32 %v867, 0.3275911
          %v872 = vmul.f32 %v868, 0.3275911
          %v873 = vmul.f32 %v869, 0.3275911
          %v874 = vmul.f32 %v870, 0.3275911
          %v875 = vadd.f32 %v871, 1.0
          %v876 = vadd.f32 %v872, 1.0
          %v877 = vadd.f32 %v873, 1.0
          %v878 = vadd.f32 %v874, 1.0
          %v879 = vrcp.pop %v875
          %v880 = vmul.f32 %v875, %v879
          %v881 = vsub.f32 1.0, %v880
          %v882 = vmul.f32 %v879, %v881
          %v883 = vadd.f32 %v879, %v882
          %vm884 = vweird.f32 %v875
          %vm885 = vweird.f32 %v879
          %vm886 = vmor %vm884, %vm885
          %v887 = vsel %vm886, %v879, %v883
          %v888 = vand.u32 2147483647, %v875
          %vm889 = vcmp.eq.f32.partialorder %v888, 8.507059e+37
          %v890 = vand.u32 %v875, 2147483648
          %v891 = vor.u32 1.1754944e-38, %v890
          %v892 = vsel %vm889, %v891, %v887
          %v893 = vrcp.pop %v876
          %v894 = vmul.f32 %v876, %v893
          %v895 = vsub.f32 1.0, %v894
          %v896 = vmul.f32 %v893, %v895
          %v897 = vadd.f32 %v893, %v896
          %vm898 = vweird.f32 %v876
          %vm899 = vweird.f32 %v893
          %vm900 = vmor %vm898, %vm899
          %v901 = vsel %vm900, %v893, %v897
          %v902 = vand.u32 2147483647, %v876
          %vm903 = vcmp.eq.f32.partialorder %v902, 8.507059e+37
          %v904 = vand.u32 %v876, 2147483648
          %v905 = vor.u32 1.1754944e-38, %v904
          %v906 = vsel %vm903, %v905, %v901
          %v907 = vrcp.pop %v877
          %v908 = vmul.f32 %v877, %v907
          %v909 = vsub.f32 1.0, %v908
          %v910 = vmul.f32 %v907, %v909
          %v911 = vadd.f32 %v907, %v910
          %vm912 = vweird.f32 %v877
          %vm913 = vweird.f32 %v907
          %vm914 = vmor %vm912, %vm913
          %v915 = vsel %vm914, %v907, %v911
          %v916 = vand.u32 2147483647, %v877
          %vm917 = vcmp.eq.f32.partialorder %v916, 8.507059e+37
          %v918 = vand.u32 %v877, 2147483648
          %v919 = vor.u32 1.1754944e-38, %v918
          %v920 = vsel %vm917, %v919, %v915
          %v921 = vrcp.pop %v878
          %v922 = vmul.f32 %v878, %v921
          %v923 = vsub.f32 1.0, %v922
          %v924 = vmul.f32 %v921, %v923
          %v925 = vadd.f32 %v921, %v924
          %vm926 = vweird.f32 %v878
          %vm927 = vweird.f32 %v921
          %vm928 = vmor %vm926, %vm927
          %v929 = vsel %vm928, %v921, %v925
          %v930 = vand.u32 2147483647, %v878
          %vm931 = vcmp.eq.f32.partialorder %v930, 8.507059e+37
          %v932 = vand.u32 %v878, 2147483648
          %v933 = vor.u32 1.1754944e-38, %v932
          %v934 = vsel %vm931, %v933, %v929
          %v935 = vmul.f32 %v892, 1.0614054
          %v936 = vmul.f32 %v906, 1.0614054
          %v937 = vmul.f32 %v920, 1.0614054
          %v938 = vmul.f32 %v934, 1.0614054
          %v939 = vadd.f32 %v935, -1.4531521
          %v940 = vadd.f32 %v936, -1.4531521
          %v941 = vadd.f32 %v937, -1.4531521
          %v942 = vadd.f32 %v938, -1.4531521
          %v943 = vmul.f32 %v939, %v892
          %v944 = vmul.f32 %v940, %v906
          %v945 = vmul.f32 %v941, %v920
          %v946 = vmul.f32 %v942, %v934
          %v947 = vadd.f32 %v943, 1.4214138
          %v948 = vadd.f32 %v944, 1.4214138
          %v949 = vadd.f32 %v945, 1.4214138
          %v950 = vadd.f32 %v946, 1.4214138
          %v951 = vmul.f32 %v947, %v892
          %v952 = vmul.f32 %v948, %v906
          %v953 = vmul.f32 %v949, %v920
          %v954 = vmul.f32 %v950, %v934
          %v955 = vadd.f32 %v951, -0.28449672
          %v956 = vadd.f32 %v952, -0.28449672
          %v957 = vadd.f32 %v953, -0.28449672
          %v958 = vadd.f32 %v954, -0.28449672
          %v959 = vmul.f32 %v955, %v892
          %v960 = vmul.f32 %v956, %v906
          %v961 = vmul.f32 %v957, %v920
          %v962 = vmul.f32 %v958, %v934
          %v963 = vadd.f32 %v959, 0.2548296
          %v964 = vadd.f32 %v960, 0.2548296
          %v965 = vadd.f32 %v961, 0.2548296
          %v966 = vadd.f32 %v962, 0.2548296
          %v967 = vmul.f32 %v963, %v892
          %v968 = vmul.f32 %v964, %v906
          %v969 = vmul.f32 %v965, %v920
          %v970 = vmul.f32 %v966, %v934
          %v971 = vsub.f32 0.0, %v867
          %v972 = vsub.f32 0.0, %v868
          %v973 = vsub.f32 0.0, %v869
          %v974 = vsub.f32 0.0, %v870
          %v975 = vmul.f32 %v971, %v867
          %v976 = vmul.f32 %v972, %v868
          %v977 = vmul.f32 %v973, %v869
          %v978 = vmul.f32 %v974, %v870
          %v979 = vmul.f32 %v975, 1.442695
          %v980 = vpow.pop %v979
          %v981 = vmul.f32 %v976, 1.442695
          %v982 = vpow.pop %v981
          %v983 = vmul.f32 %v977, 1.442695
          %v984 = vpow.pop %v983
          %v985 = vmul.f32 %v978, 1.442695
          %v986 = vpow.pop %v985
          %v987 = vmul.f32 %v967, %v980
          %v988 = vmul.f32 %v968, %v982
          %v989 = vmul.f32 %v969, %v984
          %v990 = vmul.f32 %v970, %v986
          %v991 = vsub.f32 1.0, %v987
          %v992 = vsub.f32 1.0, %v988
          %v993 = vsub.f32 1.0, %v989
          %v994 = vsub.f32 1.0, %v990
          %v995 = vmul.f32 %v863, %v991
          %v996 = vmul.f32 %v864, %v992
          %v997 = vmul.f32 %v865, %v993
          %v998 = vmul.f32 %v866, %v994
          %v999 = vadd.f32 %v995, 1.0
          %v1000 = vadd.f32 %v996, 1.0
          %v1001 = vadd.f32 %v997, 1.0
          %v1002 = vadd.f32 %v998, 1.0
          %v1003 = vmul.f32 %v851, %v999
          %v1004 = vmul.f32 %v852, %v1000
          %v1005 = vmul.f32 %v853, %v1001
          %v1006 = vmul.f32 %v854, %v1002
          %v1007 = vpack.c.bf16 %v1004, %v1003
          %v1008 = vpack.c.bf16 %v1006, %v1005
          %s1009 = smul.addr %s810, 4
          %s1010 = scalar_lea.vmem %s7, %s1009
          %v1011 = vld [vmem:[%s1010] sm:$0xf]
          %v1012 = vld [vmem:[%s1010 + $0x4] sm:$0xf]
          %s1013 = scalar_lea.vmem %s8, %s655
          %v1014 = vld [vmem:[%s1013] sm:$0x1]
          %v1016 = vperm.slane %v1014, 0
          %v1020 = vunpack.c.l.b16 %v1011
          %v1021 = vunpack.c.l.b16 %v1012
          %v1022 = vpack.c.b16 %v1021, %v1020
          %v1025 = vsel %vm698, %v1007, 0
          %v1028 = vsel %vm698, %v1008, 0
          %1030 = vmatpush.bf16.msra.mxu0 0
          %1031 = vmatpush.bf16.msra.mxu0 0
          %1032 = vmatpush.bf16.msra.mxu0 0
          %1033 = vmatpush.bf16.msra.mxu0 0
          %1034 = vmatpush.bf16.msra.mxu0 0
          %1035 = vmatpush.bf16.msra.mxu0 0
          %1036 = vmatpush.bf16.msra.mxu0 0
          %1037 = vmatpush.bf16.msra.mxu0 %v1022
          %1038 = vmatmul.bf16.gmra.mxu0 %v1025
          %v1039 = vpop.f32.mrf.mxu0
          %v1040 = vadd.f32 %v1016, %v1039
          %v1041 = vpop.f32.mrf.mxu0
          %v1042 = vadd.f32 %v1016, %v1041
          %1043 = vmatmul.bf16.gmra.mxu0 %v1028
          %v1044 = vpop.f32.mrf.mxu0
          %v1045 = vadd.f32 %v1016, %v1044
          %v1046 = vpop.f32.mrf.mxu0
          %v1047 = vadd.f32 %v1016, %v1046
          %1048 = vdwg.mxu0
          %1049 = vxpose.xlu0.b32.start [1/16] %v1040, 128
          %1050 = vxpose.xlu0.b32.cont [2/16] %v1042, 128
          %1051 = vxpose.xlu0.b32.cont [3/16] %v1045, 128
          %1052 = vxpose.xlu0.b32.cont [4/16] %v1047, 128
          %1053 = vxpose.xlu0.b32.cont [5/16] 0.0, 128
          %1054 = vxpose.xlu0.b32.cont [6/16] 0.0, 128
          %1055 = vxpose.xlu0.b32.cont [7/16] 0.0, 128
          %1056 = vxpose.xlu0.b32.cont [8/16] 0.0, 128
          %1057 = vxpose.xlu0.b32.cont [9/16] 0.0, 128
          %1058 = vxpose.xlu0.b32.cont [10/16] 0.0, 128
          %1059 = vxpose.xlu0.b32.cont [11/16] 0.0, 128
          %1060 = vxpose.xlu0.b32.cont [12/16] 0.0, 128
          %1061 = vxpose.xlu0.b32.cont [13/16] 0.0, 128
          %1062 = vxpose.xlu0.b32.cont [14/16] 0.0, 128
          %1063 = vxpose.xlu0.b32.cont [15/16] 0.0, 128
          %1064 = vxpose.xlu0.b32.end [16/16] 0.0, 128
          %v1065 = vpop.trf.xlu0
          %v1066 = vpop.trf.xlu0
          %v1067 = vpop.trf.xlu0
          %v1068 = vpop.trf.xlu0
          %v1069 = vpop.trf.xlu0
          %v1070 = vpop.trf.xlu0
          %v1071 = vpop.trf.xlu0
          %v1072 = vpop.trf.xlu0
          %v1073 = vpop.trf.xlu0
          %v1074 = vpop.trf.xlu0
          %v1075 = vpop.trf.xlu0
          %v1076 = vpop.trf.xlu0
          %v1077 = vpop.trf.xlu0
          %v1078 = vpop.trf.xlu0
          %v1079 = vpop.trf.xlu0
          %v1080 = vpop.trf.xlu0
          %v1081 = vadd.f32 %v660, %v1065
          %v1082 = vadd.f32 %v661, %v1066
          %s1083 = scalar_lea.vmem %s9, %s655
          %v1084 = vld [vmem:[%s1083] sm:$0x1]
          %s1085 = scalar_lea.vmem %s10, %s655
          %v1086 = vld [vmem:[%s1085] sm:$0x1]
          %vm1087 = vcmask 261120
          %v1088 = vsel %vm1087, %v1081, 0.0
          %1089 = vadd.xlane.f32.xlu0 %v1088
          %v1090 = vpop.xlane.xlu0 %1089
          %v1091 = vsel %vm1087, %v1082, 0.0
          %1092 = vadd.xlane.f32.xlu0 %v1091
          %v1093 = vpop.xlane.xlu0 %1092
          %v1094 = vrcp.pop 32.0
          %v1095 = vmul.f32 32.0, %v1094
          %v1096 = vsub.f32 1.0, %v1095
          %v1097 = vmul.f32 %v1094, %v1096
          %v1098 = vadd.f32 %v1094, %v1097
          %vm1099 = vweird.f32 %v1094
          %v1100 = vsel %vm1099, %v1094, %v1098
          %v1101 = vmul.f32 %v1090, %v1100
          %v1102 = vmul.f32 %v1093, %v1100
          %v1103 = vsub.f32 %v1081, %v1101
          %v1104 = vsub.f32 %v1082, %v1102
          %v1105 = vmul.f32 %v1103, %v1103
          %v1106 = vmul.f32 %v1104, %v1104
          %v1107 = vsel %vm1087, %v1105, 0.0
          %1108 = vadd.xlane.f32.xlu0 %v1107
          %v1109 = vpop.xlane.xlu0 %1108
          %v1110 = vsel %vm1087, %v1106, 0.0
          %1111 = vadd.xlane.f32.xlu0 %v1110
          %v1112 = vpop.xlane.xlu0 %1111
          %v1113 = vmul.f32 %v1109, %v1100
          %v1114 = vmul.f32 %v1112, %v1100
          %v1115 = vadd.f32 %v1113, 1e-05
          %v1116 = vadd.f32 %v1114, 1e-05
          %v1117 = vrsqrt.pop %v1115
          %v1118 = vmul.f32 %v1117, %v1115
          %v1119 = vmul.f32 %v1118, %v1117
          %v1120 = vmul.f32 0.5, %v1119
          %v1121 = vsub.f32 1.5, %v1120
          %v1122 = vmul.f32 %v1117, %v1121
          %vm1123 = vweird.f32 %v1115
          %vm1124 = vweird.f32 %v1117
          %vm1125 = vmor %vm1123, %vm1124
          %v1126 = vsel %vm1125, %v1117, %v1122
          %v1127 = vrsqrt.pop %v1116
          %v1128 = vmul.f32 %v1127, %v1116
          %v1129 = vmul.f32 %v1128, %v1127
          %v1130 = vmul.f32 0.5, %v1129
          %v1131 = vsub.f32 1.5, %v1130
          %v1132 = vmul.f32 %v1127, %v1131
          %vm1133 = vweird.f32 %v1116
          %vm1134 = vweird.f32 %v1127
          %vm1135 = vmor %vm1133, %vm1134
          %v1136 = vsel %vm1135, %v1127, %v1132
          %v1137 = vmul.f32 %v1103, %v1126
          %v1138 = vmul.f32 %v1104, %v1136
          %v1140 = vperm.slane %v1084, 0
          %v1142 = vmul.f32 %v1137, %v1140
          %v1143 = vmul.f32 %v1138, %v1140
          %v1145 = vperm.slane %v1086, 0
          %v1147 = vadd.f32 %v1142, %v1145
          %v1148 = vadd.f32 %v1143, %v1145
          %v1149 = vpack.c.bf16 %v1148, %v1147
          %s1150 = smul.u32 %s655, 4
          %s1151 = smul.addr %s1150, 4
          %s1152 = scalar_lea.vmem %s11, %s1151
          %v1153 = vld [vmem:[%s1152] sm:$0xf]
          %v1154 = vld [vmem:[%s1152 + $0x4] sm:$0xf]
          %v1155 = vld [vmem:[%s1152 + $0x8] sm:$0xf]
          %v1156 = vld [vmem:[%s1152 + $0xc] sm:$0xf]
          %s1157 = scalar_lea.vmem %s12, %s655
          %v1158 = vld [vmem:[%s1157] sm:$0x1]
          %v1160 = vperm.slane %v1158, 0
          %v1166 = vunpack.c.l.b16 %v1153
          %v1167 = vunpack.c.l.b16 %v1154
          %v1168 = vunpack.c.l.b16 %v1155
          %v1169 = vunpack.c.l.b16 %v1156
          %v1170 = vpack.c.b16 %v1167, %v1166
          %v1171 = vpack.c.b16 %v1169, %v1168
          %v1175 = vsel %vm1087, %v1149, 0
          %1177 = vmatpush.bf16.msra.mxu0 0
          %1178 = vmatpush.bf16.msra.mxu0 0
          %1179 = vmatpush.bf16.msra.mxu0 0
          %1180 = vmatpush.bf16.msra.mxu0 0
          %1181 = vmatpush.bf16.msra.mxu0 0
          %1182 = vmatpush.bf16.msra.mxu0 0
          %1183 = vmatpush.bf16.msra.mxu0 %v1171
          %1184 = vmatpush.bf16.msra.mxu0 %v1170
          %1185 = vmatmul.bf16.gmra.mxu0 %v1175
          %v1186 = vpop.f32.mrf.mxu0
          %v1187 = vadd.f32 %v1160, %v1186
          %v1188 = vpop.f32.mrf.mxu0
          %v1189 = vadd.f32 %v1160, %v1188
          %1190 = vdwg.mxu0
          %v1191 = vmul.f32 %v1187, 0.5
          %v1192 = vmul.f32 %v1189, 0.5
          %v1193 = vmul.f32 %v1187, 0.70710677
          %v1194 = vmul.f32 %v1189, 0.70710677
          %vm1195 = vcmp.ge.f32.partialorder %v1193, 0.0
          %vm1196 = vcmp.ge.f32.partialorder %v1194, 0.0
          %v1197 = vsel %vm1195, 1.0, -1.0
          %v1198 = vsel %vm1196, 1.0, -1.0
          %v1199 = vand.u32 2147483647, %v1193
          %v1200 = vand.u32 2147483647, %v1194
          %v1201 = vmul.f32 %v1199, 0.3275911
          %v1202 = vmul.f32 %v1200, 0.3275911
          %v1203 = vadd.f32 %v1201, 1.0
          %v1204 = vadd.f32 %v1202, 1.0
          %v1205 = vrcp.pop %v1203
          %v1206 = vmul.f32 %v1203, %v1205
          %v1207 = vsub.f32 1.0, %v1206
          %v1208 = vmul.f32 %v1205, %v1207
          %v1209 = vadd.f32 %v1205, %v1208
          %vm1210 = vweird.f32 %v1203
          %vm1211 = vweird.f32 %v1205
          %vm1212 = vmor %vm1210, %vm1211
          %v1213 = vsel %vm1212, %v1205, %v1209
          %v1214 = vand.u32 2147483647, %v1203
          %vm1215 = vcmp.eq.f32.partialorder %v1214, 8.507059e+37
          %v1216 = vand.u32 %v1203, 2147483648
          %v1217 = vor.u32 1.1754944e-38, %v1216
          %v1218 = vsel %vm1215, %v1217, %v1213
          %v1219 = vrcp.pop %v1204
          %v1220 = vmul.f32 %v1204, %v1219
          %v1221 = vsub.f32 1.0, %v1220
          %v1222 = vmul.f32 %v1219, %v1221
          %v1223 = vadd.f32 %v1219, %v1222
          %vm1224 = vweird.f32 %v1204
          %vm1225 = vweird.f32 %v1219
          %vm1226 = vmor %vm1224, %vm1225
          %v1227 = vsel %vm1226, %v1219, %v1223
          %v1228 = vand.u32 2147483647, %v1204
          %vm1229 = vcmp.eq.f32.partialorder %v1228, 8.507059e+37
          %v1230 = vand.u32 %v1204, 2147483648
          %v1231 = vor.u32 1.1754944e-38, %v1230
          %v1232 = vsel %vm1229, %v1231, %v1227
          %v1233 = vmul.f32 %v1218, 1.0614054
          %v1234 = vmul.f32 %v1232, 1.0614054
          %v1235 = vadd.f32 %v1233, -1.4531521
          %v1236 = vadd.f32 %v1234, -1.4531521
          %v1237 = vmul.f32 %v1235, %v1218
          %v1238 = vmul.f32 %v1236, %v1232
          %v1239 = vadd.f32 %v1237, 1.4214138
          %v1240 = vadd.f32 %v1238, 1.4214138
          %v1241 = vmul.f32 %v1239, %v1218
          %v1242 = vmul.f32 %v1240, %v1232
          %v1243 = vadd.f32 %v1241, -0.28449672
          %v1244 = vadd.f32 %v1242, -0.28449672
          %v1245 = vmul.f32 %v1243, %v1218
          %v1246 = vmul.f32 %v1244, %v1232
          %v1247 = vadd.f32 %v1245, 0.2548296
          %v1248 = vadd.f32 %v1246, 0.2548296
          %v1249 = vmul.f32 %v1247, %v1218
          %v1250 = vmul.f32 %v1248, %v1232
          %v1251 = vsub.f32 0.0, %v1199
          %v1252 = vsub.f32 0.0, %v1200
          %v1253 = vmul.f32 %v1251, %v1199
          %v1254 = vmul.f32 %v1252, %v1200
          %v1255 = vmul.f32 %v1253, 1.442695
          %v1256 = vpow.pop %v1255
          %v1257 = vmul.f32 %v1254, 1.442695
          %v1258 = vpow.pop %v1257
          %v1259 = vmul.f32 %v1249, %v1256
          %v1260 = vmul.f32 %v1250, %v1258
          %v1261 = vsub.f32 1.0, %v1259
          %v1262 = vsub.f32 1.0, %v1260
          %v1263 = vmul.f32 %v1197, %v1261
          %v1264 = vmul.f32 %v1198, %v1262
          %v1265 = vadd.f32 %v1263, 1.0
          %v1266 = vadd.f32 %v1264, 1.0
          %v1267 = vmul.f32 %v1191, %v1265
          %v1268 = vmul.f32 %v1192, %v1266
          %v1269 = vpack.c.bf16 %v1268, %v1267
          %s1270 = smul.addr %s1150, 4
          %s1271 = scalar_lea.vmem %s13, %s1270
          %v1272 = vld [vmem:[%s1271] sm:$0xf]
          %v1273 = vld [vmem:[%s1271 + $0x4] sm:$0xf]
          %v1274 = vld [vmem:[%s1271 + $0x8] sm:$0xf]
          %v1275 = vld [vmem:[%s1271 + $0xc] sm:$0xf]
          %s1276 = scalar_lea.vmem %s14, %s655
          %v1277 = vld [vmem:[%s1276] sm:$0x1]
          %v1279 = vperm.slane %v1277, 0
          %v1285 = vunpack.c.l.b16 %v1272
          %v1286 = vunpack.c.l.b16 %v1273
          %v1287 = vunpack.c.l.b16 %v1274
          %v1288 = vunpack.c.l.b16 %v1275
          %v1289 = vpack.c.b16 %v1286, %v1285
          %v1290 = vpack.c.b16 %v1288, %v1287
          %v1294 = vsel %vm1087, %v1269, 0
          %1296 = vmatpush.bf16.msra.mxu0 0
          %1297 = vmatpush.bf16.msra.mxu0 0
          %1298 = vmatpush.bf16.msra.mxu0 0
          %1299 = vmatpush.bf16.msra.mxu0 0
          %1300 = vmatpush.bf16.msra.mxu0 0
          %1301 = vmatpush.bf16.msra.mxu0 0
          %1302 = vmatpush.bf16.msra.mxu0 %v1290
          %1303 = vmatpush.bf16.msra.mxu0 %v1289
          %1304 = vmatmul.bf16.gmra.mxu0 %v1294
          %v1305 = vpop.f32.mrf.mxu0
          %v1306 = vadd.f32 %v1279, %v1305
          %v1307 = vpop.f32.mrf.mxu0
          %v1308 = vadd.f32 %v1279, %v1307
          %1309 = vdwg.mxu0
          %v1310 = vadd.f32 %v1081, %v1306
          %v1311 = vadd.f32 %v1082, %v1308
        $region101: #{mlp_mixer_forward.1} parent=95 // loop_footer
          %s659 = sadd.s32 1, %s655
        $region102: #{mlp_mixer_forward.1} parent=95 // loop_footer_branch
          %654 = sbr.rel target = $region98
        $region103: #{mlp_mixer_forward.1} parent=95 // loop_exit
          _
        %vm1312 = vcmask 261120
        %v1313 = vsel %vm1312, %v660, 0.0
        %1314 = vadd.xlane.f32.xlu0 %v1313
        %v1315 = vpop.xlane.xlu0 %1314
        %v1316 = vsel %vm1312, %v661, 0.0
        %1317 = vadd.xlane.f32.xlu0 %v1316
        %v1318 = vpop.xlane.xlu0 %1317
        %v1319 = vrcp.pop 32.0
        %v1320 = vmul.f32 32.0, %v1319
        %v1321 = vsub.f32 1.0, %v1320
        %v1322 = vmul.f32 %v1319, %v1321
        %v1323 = vadd.f32 %v1319, %v1322
        %vm1324 = vweird.f32 %v1319
        %v1325 = vsel %vm1324, %v1319, %v1323
        %v1326 = vmul.f32 %v1315, %v1325
        %v1327 = vmul.f32 %v1318, %v1325
        %v1328 = vadd.f32 %v1326, %v1327
        %v1329 = vrot.slane %v1328, 4
        %v1330 = vadd.f32 %v1328, %v1329
        %v1331 = vrot.slane %v1330, 2
        %v1332 = vadd.f32 %v1330, %v1331
        %v1333 = vrot.slane %v1332, 1
        %v1334 = vadd.f32 %v1332, %v1333
        %v1335 = vrcp.pop 16.0
        %v1336 = vmul.f32 16.0, %v1335
        %v1337 = vsub.f32 1.0, %v1336
        %v1338 = vmul.f32 %v1335, %v1337
        %v1339 = vadd.f32 %v1335, %v1338
        %vm1340 = vweird.f32 %v1335
        %v1341 = vsel %vm1340, %v1335, %v1339
        %v1342 = vmul.f32 %v1334, %v1341
        %v1343 = vsub.f32 %v660, %v1342
        %v1344 = vsub.f32 %v661, %v1342
        %v1345 = vmul.f32 %v1343, %v1343
        %v1346 = vmul.f32 %v1344, %v1344
        %v1347 = vsel %vm1312, %v1345, 0.0
        %1348 = vadd.xlane.f32.xlu0 %v1347
        %v1349 = vpop.xlane.xlu0 %1348
        %v1350 = vsel %vm1312, %v1346, 0.0
        %1351 = vadd.xlane.f32.xlu0 %v1350
        %v1352 = vpop.xlane.xlu0 %1351
        %v1353 = vmul.f32 %v1349, %v1325
        %v1354 = vmul.f32 %v1352, %v1325
        %v1355 = vadd.f32 %v1353, %v1354
        %v1356 = vrot.slane %v1355, 4
        %v1357 = vadd.f32 %v1355, %v1356
        %v1358 = vrot.slane %v1357, 2
        %v1359 = vadd.f32 %v1357, %v1358
        %v1360 = vrot.slane %v1359, 1
        %v1361 = vadd.f32 %v1359, %v1360
        %v1362 = vmul.f32 %v1361, %v1341
        %v1363 = vadd.f32 %v1362, 1e-05
        %v1364 = vrsqrt.pop %v1363
        %v1365 = vmul.f32 %v1364, %v1363
        %v1366 = vmul.f32 %v1365, %v1364
        %v1367 = vmul.f32 0.5, %v1366
        %v1368 = vsub.f32 1.5, %v1367
        %v1369 = vmul.f32 %v1364, %v1368
        %vm1370 = vweird.f32 %v1363
        %vm1371 = vweird.f32 %v1364
        %vm1372 = vmor %vm1370, %vm1371
        %v1373 = vsel %vm1372, %v1364, %v1369
        %v1374 = vmul.f32 %v1343, %v1373
        %v1375 = vmul.f32 %v1344, %v1373
        %v1376 = vld [vmem:[%s15] sm:$0xff]
        %v1377 = vld [vmem:[%s15 + $0x8] sm:$0xff]
        %v1378 = vmul.f32 %v1374, %v1376
        %v1379 = vmul.f32 %v1375, %v1377
        %v1380 = vld [vmem:[%s16] sm:$0xff]
        %v1381 = vld [vmem:[%s16 + $0x8] sm:$0xff]
        %v1382 = vadd.f32 %v1378, %v1380
        %v1383 = vadd.f32 %v1379, %v1381
        %v1384 = vsel %vm1312, %v1382, 0.0
        %1385 = vadd.xlane.f32.xlu0 %v1384
        %v1386 = vpop.xlane.xlu0 %1385
        %v1387 = vsel %vm1312, %v1383, 0.0
        %1388 = vadd.xlane.f32.xlu0 %v1387
        %v1389 = vpop.xlane.xlu0 %1388
        %v1390 = vmul.f32 %v1386, %v1325
        %v1391 = vmul.f32 %v1389, %v1325
        %v1392 = vpack.c.bf16 %v1391, %v1390
        %v1393 = vld [vmem:[%s17] sm:$0xf]
        %v1394 = vld [vmem:[%s17 + $0x4] sm:$0xf]
        %v1395 = vld [vmem:[%s18] sm:$0x1]
        %v1397 = vunpack.c.l.b16 %v1392
        %v1398 = vunpack.c.h.b16 %v1392
        %v1399 = vlaneseq
        %v1400 = vand.u32 %v1399, 127
        %v1401 = vperm.slane %v1397, %v1400
        %v1402 = vadd.s32 %v1400, 4294967288
        %v1403 = vperm.slane %v1398, %v1402
        %vm1404 = vcmask 130112
        %v1405 = vsel %vm1404, %v1403, %v1401
        %v1406 = vpack.c.b16 %v1405, %v1405
        %v1409 = vunpack.c.l.b16 %v1393
        %v1410 = vunpack.c.l.b16 %v1394
        %v1411 = vpack.c.b16 %v1410, %v1409
        %vm1413 = vcmask 130048
        %v1415 = vsel %vm1413, %v1406, 0
        %1417 = vmatpush.bf16.msra.mxu0 0
        %1418 = vmatpush.bf16.msra.mxu0 0
        %1419 = vmatpush.bf16.msra.mxu0 0
        %1420 = vmatpush.bf16.msra.mxu0 0
        %1421 = vmatpush.bf16.msra.mxu0 0
        %1422 = vmatpush.bf16.msra.mxu0 0
        %1423 = vmatpush.bf16.msra.mxu0 0
        %1424 = vmatpush.bf16.msra.mxu0 %v1411
        %1425 = vmatmul.bf16.gmra.mxu0 %v1415
        %v1426 = vpop.f32.mrf.mxu0
        %v1427 = vadd.f32 %v1395, %v1426
        %v1428 = vpop.f32.mrf.mxu0
        %1429 = vdwg.mxu0
        %vm1430 = vcmp.lt.s32.totalorder %v1400, 10
        %v1431 = vsel %vm1430, %v1427, -1e+30
        %vm1432 = vcmask 1040384
        %v1433 = vsel %vm1432, %v1431, -inf
        %1434 = vmax.xlane.f32.xlu0 %v1433
        %v1435 = vpop.xlane.xlu0 %1434
        %v1436 = vsub.f32 %v1431, %v1435
        %v1437 = vmul.f32 %v1436, 1.442695
        %v1438 = vpow.pop %v1437
        %v1439 = vsel %vm1432, %v1438, 0.0
        %1440 = vadd.xlane.f32.xlu0 %v1439
        %v1441 = vpop.xlane.xlu0 %1440
        %v1442 = vrcp.pop %v1441
        %v1443 = vmul.f32 %v1438, %v1442
        %1444 = vst [vmem:[%s594] sm:$0x1] %v1443
        %s1445 = sand.u32 %s445, 1
        %s1446 = scalar_lea.sflag [#allocation3], %s1445
        %s1447 = sand.u32 %s445, 1
        %s1448 = scalar_lea.vmem [#allocation2], %s1447
        // Predicated region
        $region104: #{mlp_mixer_forward.1} parent=95 // pred_check
          %p1449 = pneg %p455
        $region105: #{mlp_mixer_forward.1} parent=95 // pred_check_branch
          %1451 = sbr.rel (%p1449) target = $region107
        $region106: #{mlp_mixer_forward.1} parent=95 // pred_region
          %1453 = vsyncadd %s1446, 0
          %s1454 = scalar_lea.hbm %s19, %s33
          %s1456 = sshll.u32 %s1448, 4
          %s1457 = int_to_ptr.vmem [resolvable:$true] %s1456
          %s1458 = sshll.u32 %s1454, 4
          %s1459 = int_to_ptr.hbm [resolvable:$true] %s1458
          %1461 = dma.vmem_to_hbm [thread:$0]  %s1457, 16, %s1459, %s1446
        $region107: #{mlp_mixer_forward.1} parent=95 // pred_fallthru
          _
      $region96: #{mlp_mixer_forward.1} parent=5 // pred_fallthru
        _
      %p1462 = scmp.le.s32.totalorder 2, %s28
      // Predicated region
      $region108: #{mlp_mixer_forward.1} parent=5 // pred_check
        %p1463 = pneg %p1462
      $region109: #{mlp_mixer_forward.1} parent=5 // pred_check_branch
        %1465 = sbr.rel (%p1463) target = $region111
      $region110: #{mlp_mixer_forward.1} parent=5 // pred_region
        %s1466 = ssub.s32 %s28, 2
        // Predicated region
        $region112: #{mlp_mixer_forward.1} parent=110 // pred_check
          %p1467 = pneg %p461
        $region113: #{mlp_mixer_forward.1} parent=110 // pred_check_branch
          %1469 = sbr.rel (%p1467) target = $region115
        $region114: #{mlp_mixer_forward.1} parent=110 // pred_region
          %s1470 = sand.u32 %s446, 1
          %s1471 = scalar_lea.sflag [#allocation3], %s1470
          %s1472 = sand.u32 %s446, 1
          %s1473 = scalar_lea.vmem [#allocation2], %s1472
          %1475 = dma.done %s1471, 16
        $region115: #{mlp_mixer_forward.1} parent=110 // pred_fallthru
          _
      $region111: #{mlp_mixer_forward.1} parent=5 // pred_fallthru
        _
    $region6: #{mlp_mixer_forward.1} parent=1 // loop_footer
      %s32 = sadd.s32 1, %s28
    $region7: #{mlp_mixer_forward.1} parent=1 // loop_footer_branch
      %27 = sbr.rel target = $region3
    $region8: #{mlp_mixer_forward.1} parent=1 // loop_exit
      _
    %1476 = vsyncpa [#allocation3], 1
    %s1477 = scalar_lea.sflag [#allocation3], 1
    %1478 = vsyncpa %s1477, 1

</llo_original>
